<compile_context>
chip_gen: v7x
topology: tpu7x:2x2x1
jax: 0.10.0
libtpu: 0.0.40
codegen_flags: <defaults>
</compile_context>

<pallas_src>
import math
from functools import partial

import jax
import jax.numpy as jnp
from jax import lax
from jax.experimental import pallas as pl
from jax.experimental.pallas import tpu as pltpu


def _attn_kernel(x_ref, wqkv_ref, wp_ref, bqkv_ref, bp_ref, o_ref, y_ref, *,
                 n_head, kv_head, h_dim, b_block, seq_len, tq, approx_recip):
    """One grid step handles `b_block` batch elements.

    x_ref   : (b_block*T, C) slab, compute dtype (f32 or bf16)
    wqkv_ref: (C, C + 2*C_kv)   [Wq*1/sqrt(hd) | Wk | Wv]
    wp_ref  : (C, C)            c_proj weight
    bqkv_ref: (1, C + 2*C_kv)   fused (scaled) qkv bias, f32
    bp_ref  : (1, C)            c_proj bias, f32
    o_ref   : (b_block*T, C)
    y_ref   : (b_block, T, C)   VMEM scratch holding per-head attention outputs
    """
    bb, T = b_block, seq_len
    C = n_head * h_dim
    C_kv = kv_head * h_dim
    g = n_head // kv_head
    cdt = x_ref.dtype                       # MXU operand dtype (bf16 fast path)

    # Fused QKV projection over the whole slab (one MXU weight push, one x pass).
    qkv = jnp.dot(x_ref[...], wqkv_ref[...],
                  preferred_element_type=jnp.float32)             # (bb*T, C+2*C_kv) f32
    qkv = qkv + bqkv_ref[...]                                     # (1, .) implicit bcast

    # Slice q/k/v and cast MXU operands once (hoisted out of the head loops).
    q3 = qkv[:, :C].astype(cdt).reshape(bb, T, C)
    k3 = qkv[:, C:C + C_kv].astype(cdt).reshape(bb, T, C_kv)
    v3 = qkv[:, C + C_kv:].astype(cdt).reshape(bb, T, C_kv)

    num_qb = T // tq
    for qb in range(num_qb):                       # static unroll over query blocks
        q0 = qb * tq
        kv_len = q0 + tq                           # causal: later keys are fully masked
        row = lax.broadcasted_iota(jnp.int32, (tq, kv_len), 0)
        col = lax.broadcasted_iota(jnp.int32, (tq, kv_len), 1)
        # Large finite negative (not -inf) so exp never sees inf - inf.
        mask_bias = jnp.where(col <= q0 + row, 0.0, -1e30).astype(jnp.float32)

        for kvh in range(kv_head):                 # K/V sliced once per KV head (GQA)
            k_h = k3[:, :kv_len, kvh * h_dim:(kvh + 1) * h_dim]    # (bb, kv_len, hd)
            v_h = v3[:, :kv_len, kvh * h_dim:(kvh + 1) * h_dim]
            for gi in range(g):                    # query heads sharing this KV head
                h = kvh * g + gi                   # h // g == kvh  (repeat_interleave)
                q_h = q3[:, q0:q0 + tq, h * h_dim:(h + 1) * h_dim]  # (bb, tq, hd)

                # QK^T: batched contraction over head dim (no explicit transpose).
                att = jnp.einsum('btd,bsd->bts', q_h, k_h,
                                 preferred_element_type=jnp.float32)  # (bb, tq, kv_len)
                att = att + mask_bias              # implicit broadcast over bb
                att = att - jnp.max(att, axis=-1, keepdims=True)
                p = jnp.exp(att)                   # f32 softmax (v5e-safe)
                denom = jnp.sum(p, axis=-1, keepdims=True)
                if approx_recip:
                    p = p * pl.reciprocal(denom, approx=True)      # EUP slot
                else:
                    p = p / denom

                y_blk = jnp.einsum('bts,bsd->btd', p.astype(cdt), v_h,
                                   preferred_element_type=jnp.float32)  # (bb, tq, hd)
                y_ref[:, q0:q0 + tq, h * h_dim:(h + 1) * h_dim] = y_blk.astype(y_ref.dtype)

    # Single full-K c_proj matmul over the whole slab, lane-dense store.
    y2 = y_ref[...].reshape(bb * T, C)
    out = jnp.dot(y2, wp_ref[...], preferred_element_type=jnp.float32)
    out = out + bp_ref[...]
    o_ref[...] = out.astype(o_ref.dtype)


def casual_self_attention(x, wq, wk, wv, wp, bq=None, bk=None, bv=None, bp=None, *,
                          n_head, kv_head, b_block=None, tq=None,
                          compute_dtype=jnp.bfloat16, approx_recip=True):
    """x: (B, T, C); weights stored as [in_features, out_features]."""
    B, T, C = x.shape
    h_dim = C // n_head
    C_kv = h_dim * kv_head
    csum = C + 2 * C_kv

    if b_block is None:
        # Keep >= 2 grid steps (ideally >= 4): feeds v7x's second TensorCore and
        # gives the BlockSpec pipeliner something to overlap; also shrinks per-step VMEM.
        b_block = max(1, B // 4)
        while B % b_block:
            b_block -= 1
    assert B % b_block == 0, "B must be divisible by b_block"

    if tq is None:
        tq = T
        for cand in (256, 128):
            if T % cand == 0 and T > cand:
                tq = cand
                break
    assert T % tq == 0, "T must be divisible by tq"

    scale = 1.0 / math.sqrt(h_dim)
    if bq is None: bq = jnp.zeros((C,), x.dtype)
    if bk is None: bk = jnp.zeros((C_kv,), x.dtype)
    if bv is None: bv = jnp.zeros((C_kv,), x.dtype)
    if bp is None: bp = jnp.zeros((C,), x.dtype)

    # Fuse [Wq*scale | Wk | Wv] once at the wrapper; cast MXU operands once.
    wqkv = jnp.concatenate([wq * scale, wk, wv], axis=1).astype(compute_dtype)  # (C, csum)
    wp_c = wp.astype(compute_dtype)
    bqkv = jnp.concatenate([bq * scale, bk, bv]).reshape(1, csum).astype(jnp.float32)
    bp2 = bp.reshape(1, C).astype(jnp.float32)
    x2 = x.reshape(B * T, C).astype(compute_dtype)

    rows = b_block * T
    kernel = partial(_attn_kernel, n_head=n_head, kv_head=kv_head, h_dim=h_dim,
                     b_block=b_block, seq_len=T, tq=tq, approx_recip=approx_recip)

    # Explicit scoped-VMEM budget from the chosen tiles (double-buffered I/O +
    # weights + f32 qkv intermediate + cdt copies + scratch + softmax temporaries),
    # capped at 64 MiB so the same sizing is valid on v7x.
    ic = jnp.dtype(compute_dtype).itemsize
    io = x.dtype.itemsize
    est = (2 * rows * C * ic            # x block (double-buffered)
           + 2 * rows * C * io          # out block (double-buffered)
           + 2 * C * csum * ic          # fused QKV weight
           + 2 * C * C * ic             # c_proj weight
           + rows * csum * (4 + ic)     # f32 qkv + cdt q/k/v copies
           + rows * C * ic              # y scratch
           + 6 * b_block * tq * T * 4)  # per-block softmax temporaries
    vmem_limit = int(min(max(est * 3 // 2, 8 << 20), 64 << 20))

    out2 = pl.pallas_call(
        kernel,
        out_shape=jax.ShapeDtypeStruct((B * T, C), x.dtype),
        grid_spec=pltpu.PrefetchScalarGridSpec(
            num_scalar_prefetch=0,
            grid=(B // b_block,),
            in_specs=[
                pl.BlockSpec((rows, C), lambda i: (i, 0)),    # x slab
                pl.BlockSpec((C, csum), lambda i: (0, 0)),    # [Wq*scale | Wk | Wv]
                pl.BlockSpec((C, C),    lambda i: (0, 0)),    # Wp (c_proj)
                pl.BlockSpec((1, csum), lambda i: (0, 0)),    # fused qkv bias
                pl.BlockSpec((1, C),    lambda i: (0, 0)),    # c_proj bias
            ],
            out_specs=pl.BlockSpec((rows, C), lambda i: (i, 0)),
            scratch_shapes=[pltpu.VMEM((b_block, T, C), compute_dtype)],
        ),
        compiler_params=pltpu.CompilerParams(
            dimension_semantics=("parallel",),
            vmem_limit_bytes=vmem_limit),
    )(x2, wqkv, wp_c, bqkv, bp2)
    return out2.reshape(B, T, C)


def _reference(x, wq, wk, wv, wp, bq, bk, bv, bp, *, n_head, kv_head):
    """Pure-JAX reference mirroring the PyTorch forward (eval, no cache, no dropout)."""
    B, T, C = x.shape
    h_dim = C // n_head
    g = n_head // kv_head
    q = (x @ wq + bq).reshape(B, T, n_head, h_dim).transpose(0, 2, 1, 3)
    k = (x @ wk + bk).reshape(B, T, kv_head, h_dim).transpose(0, 2, 1, 3)
    v = (x @ wv + bv).reshape(B, T, kv_head, h_dim).transpose(0, 2, 1, 3)
    k = jnp.repeat(k, g, axis=1)
    v = jnp.repeat(v, g, axis=1)
    att = (q @ jnp.swapaxes(k, -2, -1)) * (1.0 / math.sqrt(h_dim))
    mask = jnp.tril(jnp.ones((T, T), bool))
    att = jnp.where(mask[None, None], att, -jnp.inf)
    att = jax.nn.softmax(att, axis=-1)
    y = att @ v
    y = y.transpose(0, 2, 1, 3).reshape(B, T, C)
    return y @ wp + bp


if __name__ == "__main__":
    # config (consistent with the module): block_size=8, n_head=4, n_embd=32, GQA_factor=2
    B, T = 2, 8
    n_head, GQA_factor = 4, 2
    n_embd = 32
    kv_head = n_head // GQA_factor
    C_kv = n_embd // GQA_factor

    key = jax.random.PRNGKey(0)
    kx, kq, kk, kv_, kp, kb1, kb2, kb3, kb4, kx16 = jax.random.split(key, 10)

    x  = jax.random.normal(kx, (B, T, n_embd), dtype=jnp.float32)
    wq = 0.02 * jax.random.normal(kq,  (n_embd, n_embd), dtype=jnp.float32)
    wk = 0.02 * jax.random.normal(kk,  (n_embd, C_kv),   dtype=jnp.float32)
    wv = 0.02 * jax.random.normal(kv_, (n_embd, C_kv),   dtype=jnp.float32)
    wp = 0.02 * jax.random.normal(kp,  (n_embd, n_embd), dtype=jnp.float32)
    bq = 0.02 * jax.random.normal(kb1, (n_embd,), dtype=jnp.float32)
    bk = 0.02 * jax.random.normal(kb2, (C_kv,),   dtype=jnp.float32)
    bv = 0.02 * jax.random.normal(kb3, (C_kv,),   dtype=jnp.float32)
    bp = 0.02 * jax.random.normal(kb4, (n_embd,), dtype=jnp.float32)

    ref = _reference(x, wq, wk, wv, wp, bq, bk, bv, bp, n_head=n_head, kv_head=kv_head)

    # 1) f32 exact softmax division; default b_block=1 -> grid=(2,) (v7x-friendly)
    out_exact = casual_self_attention(x, wq, wk, wv, wp, bq, bk, bv, bp,
                                      n_head=n_head, kv_head=kv_head,
                                      compute_dtype=jnp.float32, approx_recip=False)
    out_exact = jax.block_until_ready(out_exact)
    assert out_exact.shape == (B, T, n_embd)
    assert jnp.allclose(out_exact, ref, atol=1e-4, rtol=1e-4), "f32 exact mismatch"

    # 2) default fast path: bf16 MXU operands, f32 softmax, EUP approx reciprocal
    out_fast = casual_self_attention(x, wq, wk, wv, wp, bq, bk, bv, bp,
                                     n_head=n_head, kv_head=kv_head)
    out_fast = jax.block_until_ready(out_fast)
    assert jnp.allclose(out_fast, ref, atol=2e-2, rtol=2e-2), "bf16 fast path mismatch"

    # 3) whole batch in a single grid step (exercises the batched bb=2 path)
    out_bb = casual_self_attention(x, wq, wk, wv, wp, bq, bk, bv, bp,
                                   n_head=n_head, kv_head=kv_head, b_block=B,
                                   compute_dtype=jnp.float32, approx_recip=False)
    out_bb = jax.block_until_ready(out_bb)
    assert jnp.allclose(out_bb, ref, atol=1e-4, rtol=1e-4), "b_block=B mismatch"

    # 4) query-block tiling + causal block skipping (T=16, tq=8 -> 2 query blocks)
    T2 = 16
    x16 = jax.random.normal(kx16, (B, T2, n_embd), dtype=jnp.float32)
    ref16 = _reference(x16, wq, wk, wv, wp, bq, bk, bv, bp,
                       n_head=n_head, kv_head=kv_head)
    out_tiled = casual_self_attention(x16, wq, wk, wv, wp, bq, bk, bv, bp,
                                      n_head=n_head, kv_head=kv_head, tq=8,
                                      compute_dtype=jnp.float32, approx_recip=False)
    out_tiled = jax.block_until_ready(out_tiled)
    assert jnp.allclose(out_tiled, ref16, atol=1e-4, rtol=1e-4), "query-tiling mismatch"

    print("KERNEL_OK")
</pallas_src>

<mosaic_0001>
module attributes {stable_mosaic.version = 11 : i64} {
  func.func @_attn_kernel(%arg0: i32, %arg1: memref<8x32xf32, #tpu.memory_space<vmem>>, %arg2: memref<32x64xf32, #tpu.memory_space<vmem>>, %arg3: memref<32x32xf32, #tpu.memory_space<vmem>>, %arg4: memref<1x64xf32, #tpu.memory_space<vmem>>, %arg5: memref<1x32xf32, #tpu.memory_space<vmem>>, %arg6: memref<8x32xf32, #tpu.memory_space<vmem>>, %arg7: memref<1x8x32xf32, #tpu.memory_space<vmem>>) attributes {dimension_semantics = [#tpu.dimension_semantics<parallel>], iteration_bounds = array<i64: 2>, scalar_prefetch = 0 : i64, scratch_operands = 1 : i64, tpu.core_type = #tpu.core_type<tc>, window_params = [{transform_indices = @transform_0, window_bounds = array<i64: 8, 32>}, {pipeline_mode = #tpu.pipeline_mode<synchronous>, transform_indices = @transform_1, window_bounds = array<i64: 32, 64>}, {pipeline_mode = #tpu.pipeline_mode<synchronous>, transform_indices = @transform_2, window_bounds = array<i64: 32, 32>}, {pipeline_mode = #tpu.pipeline_mode<synchronous>, transform_indices = @transform_3, window_bounds = array<i64: 1, 64>}, {pipeline_mode = #tpu.pipeline_mode<synchronous>, transform_indices = @transform_4, window_bounds = array<i64: 1, 32>}, {transform_indices = @transform_5, window_bounds = array<i64: 8, 32>}]} {
    %c0 = arith.constant 0 : index
    %c0_0 = arith.constant 0 : index
    %0 = vector.load %arg1[%c0, %c0_0] : memref<8x32xf32, #tpu.memory_space<vmem>>, vector<8x32xf32>
    %c0_1 = arith.constant 0 : index
    %c0_2 = arith.constant 0 : index
    %1 = vector.load %arg2[%c0_1, %c0_2] : memref<32x64xf32, #tpu.memory_space<vmem>>, vector<32x64xf32>
    %cst = arith.constant dense<0.000000e+00> : vector<8x64xf32>
    %2 = tpu.matmul %0, %1, %cst {dimension_numbers = #tpu.dot_dimension_numbers<[1], [0], [0], [1], [0, 0, 1, 1], [], []>} : vector<8x32xf32>, vector<32x64xf32>, vector<8x64xf32> -> vector<8x64xf32>
    %c0_3 = arith.constant 0 : index
    %c0_4 = arith.constant 0 : index
    %3 = vector.load %arg4[%c0_3, %c0_4] : memref<1x64xf32, #tpu.memory_space<vmem>>, vector<1x64xf32>
    %4 = vector.broadcast %3 : vector<1x64xf32> to vector<8x64xf32>
    %5 = arith.addf %2, %4 : vector<8x64xf32>
    %6 = vector.extract_strided_slice %5 {offsets = [0, 0], sizes = [8, 32], strides = [1, 1]} : vector<8x64xf32> to vector<8x32xf32>
    %7 = vector.shape_cast %6 : vector<8x32xf32> to vector<1x8x32xf32>
    %8 = vector.extract_strided_slice %5 {offsets = [0, 32], sizes = [8, 16], strides = [1, 1]} : vector<8x64xf32> to vector<8x16xf32>
    %9 = vector.shape_cast %8 : vector<8x16xf32> to vector<1x8x16xf32>
    %10 = vector.extract_strided_slice %5 {offsets = [0, 48], sizes = [8, 16], strides = [1, 1]} : vector<8x64xf32> to vector<8x16xf32>
    %11 = vector.shape_cast %10 : vector<8x16xf32> to vector<1x8x16xf32>
    %12 = tpu.iota {dimensions = array<i32: 0>} : vector<8x8xi32>
    %13 = tpu.iota {dimensions = array<i32: 1>} : vector<8x8xi32>
    %c0_i32 = arith.constant 0 : i32
    %14 = vector.broadcast %c0_i32 : i32 to vector<8x8xi32>
    %15 = arith.addi %14, %12 : vector<8x8xi32>
    %16 = arith.cmpi sle, %13, %15 : vector<8x8xi32>
    %cst_5 = arith.constant 0.000000e+00 : f32
    %cst_6 = arith.constant -1.000000e+30 : f32
    %17 = vector.broadcast %cst_5 : f32 to vector<8x8xf32>
    %18 = vector.broadcast %cst_6 : f32 to vector<8x8xf32>
    %19 = arith.select %16, %17, %18 : vector<8x8xi1>, vector<8x8xf32>
    %20 = vector.extract_strided_slice %9 {offsets = [0, 0, 0], sizes = [1, 8, 8], strides = [1, 1, 1]} : vector<1x8x16xf32> to vector<1x8x8xf32>
    %21 = vector.extract_strided_slice %11 {offsets = [0, 0, 0], sizes = [1, 8, 8], strides = [1, 1, 1]} : vector<1x8x16xf32> to vector<1x8x8xf32>
    %22 = vector.extract_strided_slice %7 {offsets = [0, 0, 0], sizes = [1, 8, 8], strides = [1, 1, 1]} : vector<1x8x32xf32> to vector<1x8x8xf32>
    "tpu.trace_start"() <{level = 10 : i32, message = "btd,bsd->bts"}> : () -> ()
    %cst_7 = arith.constant dense<0.000000e+00> : vector<1x8x8xf32>
    %23 = tpu.matmul %22, %20, %cst_7 {dimension_numbers = #tpu.dot_dimension_numbers<[2], [2], [1], [1], [0, 0, 0, 1, 1, 1], [0], [0]>} : vector<1x8x8xf32>, vector<1x8x8xf32>, vector<1x8x8xf32> -> vector<1x8x8xf32>
    "tpu.trace_stop"() : () -> ()
    %24 = vector.shape_cast %19 : vector<8x8xf32> to vector<1x8x8xf32>
    %25 = arith.addf %23, %24 : vector<1x8x8xf32>
    %cst_8 = arith.constant dense<0xFF800000> : vector<1x8xf32>
    %26 = vector.multi_reduction <maximumf>, %25, %cst_8 [2] : vector<1x8x8xf32> to vector<1x8xf32>
    %27 = vector.shape_cast %26 : vector<1x8xf32> to vector<1x8x1xf32>
    %28 = vector.broadcast %27 : vector<1x8x1xf32> to vector<1x8x8xf32>
    %29 = arith.subf %25, %28 : vector<1x8x8xf32>
    %30 = math.exp %29 : vector<1x8x8xf32>
    %cst_9 = arith.constant dense<0.000000e+00> : vector<1x8xf32>
    %31 = vector.multi_reduction <add>, %30, %cst_9 [2] : vector<1x8x8xf32> to vector<1x8xf32>
    %32 = vector.shape_cast %31 : vector<1x8xf32> to vector<1x8x1xf32>
    %33 = vector.broadcast %32 : vector<1x8x1xf32> to vector<1x8x8xf32>
    %34 = arith.divf %30, %33 : vector<1x8x8xf32>
    "tpu.trace_start"() <{level = 10 : i32, message = "bts,bsd->btd"}> : () -> ()
    %cst_10 = arith.constant dense<0.000000e+00> : vector<1x8x8xf32>
    %35 = tpu.matmul %34, %21, %cst_10 {dimension_numbers = #tpu.dot_dimension_numbers<[2], [1], [1], [2], [0, 0, 0, 1, 1, 2], [0], [0]>} : vector<1x8x8xf32>, vector<1x8x8xf32>, vector<1x8x8xf32> -> vector<1x8x8xf32>
    "tpu.trace_stop"() : () -> ()
    %c0_11 = arith.constant 0 : index
    %c0_12 = arith.constant 0 : index
    %c0_13 = arith.constant 0 : index
    %36 = vector.load %arg7[%c0_11, %c0_12, %c0_13] : memref<1x8x32xf32, #tpu.memory_space<vmem>>, vector<1x8x8xf32>
    tpu.vector_store %arg7[%c0_11, %c0_12, %c0_13], %35 {strides = array<i32>} : memref<1x8x32xf32, #tpu.memory_space<vmem>>, vector<1x8x8xf32>,
    %37 = vector.extract_strided_slice %7 {offsets = [0, 0, 8], sizes = [1, 8, 8], strides = [1, 1, 1]} : vector<1x8x32xf32> to vector<1x8x8xf32>
    "tpu.trace_start"() <{level = 10 : i32, message = "btd,bsd->bts"}> : () -> ()
    %cst_14 = arith.constant dense<0.000000e+00> : vector<1x8x8xf32>
    %38 = tpu.matmul %37, %20, %cst_14 {dimension_numbers = #tpu.dot_dimension_numbers<[2], [2], [1], [1], [0, 0, 0, 1, 1, 1], [0], [0]>} : vector<1x8x8xf32>, vector<1x8x8xf32>, vector<1x8x8xf32> -> vector<1x8x8xf32>
    "tpu.trace_stop"() : () -> ()
    %39 = vector.shape_cast %19 : vector<8x8xf32> to vector<1x8x8xf32>
    %40 = arith.addf %38, %39 : vector<1x8x8xf32>
    %cst_15 = arith.constant dense<0xFF800000> : vector<1x8xf32>
    %41 = vector.multi_reduction <maximumf>, %40, %cst_15 [2] : vector<1x8x8xf32> to vector<1x8xf32>
    %42 = vector.shape_cast %41 : vector<1x8xf32> to vector<1x8x1xf32>
    %43 = vector.broadcast %42 : vector<1x8x1xf32> to vector<1x8x8xf32>
    %44 = arith.subf %40, %43 : vector<1x8x8xf32>
    %45 = math.exp %44 : vector<1x8x8xf32>
    %cst_16 = arith.constant dense<0.000000e+00> : vector<1x8xf32>
    %46 = vector.multi_reduction <add>, %45, %cst_16 [2] : vector<1x8x8xf32> to vector<1x8xf32>
    %47 = vector.shape_cast %46 : vector<1x8xf32> to vector<1x8x1xf32>
    %48 = vector.broadcast %47 : vector<1x8x1xf32> to vector<1x8x8xf32>
    %49 = arith.divf %45, %48 : vector<1x8x8xf32>
    "tpu.trace_start"() <{level = 10 : i32, message = "bts,bsd->btd"}> : () -> ()
    %cst_17 = arith.constant dense<0.000000e+00> : vector<1x8x8xf32>
    %50 = tpu.matmul %49, %21, %cst_17 {dimension_numbers = #tpu.dot_dimension_numbers<[2], [1], [1], [2], [0, 0, 0, 1, 1, 2], [0], [0]>} : vector<1x8x8xf32>, vector<1x8x8xf32>, vector<1x8x8xf32> -> vector<1x8x8xf32>
    "tpu.trace_stop"() : () -> ()
    %c0_18 = arith.constant 0 : index
    %c0_19 = arith.constant 0 : index
    %c8 = arith.constant 8 : index
    %51 = vector.load %arg7[%c0_18, %c0_19, %c8] : memref<1x8x32xf32, #tpu.memory_space<vmem>>, vector<1x8x8xf32>
    tpu.vector_store %arg7[%c0_18, %c0_19, %c8], %50 {strides = array<i32>} : memref<1x8x32xf32, #tpu.memory_space<vmem>>, vector<1x8x8xf32>,
    %52 = vector.extract_strided_slice %9 {offsets = [0, 0, 8], sizes = [1, 8, 8], strides = [1, 1, 1]} : vector<1x8x16xf32> to vector<1x8x8xf32>
    %53 = vector.extract_strided_slice %11 {offsets = [0, 0, 8], sizes = [1, 8, 8], strides = [1, 1, 1]} : vector<1x8x16xf32> to vector<1x8x8xf32>
    %54 = vector.extract_strided_slice %7 {offsets = [0, 0, 16], sizes = [1, 8, 8], strides = [1, 1, 1]} : vector<1x8x32xf32> to vector<1x8x8xf32>
    "tpu.trace_start"() <{level = 10 : i32, message = "btd,bsd->bts"}> : () -> ()
    %cst_20 = arith.constant dense<0.000000e+00> : vector<1x8x8xf32>
    %55 = tpu.matmul %54, %52, %cst_20 {dimension_numbers = #tpu.dot_dimension_numbers<[2], [2], [1], [1], [0, 0, 0, 1, 1, 1], [0], [0]>} : vector<1x8x8xf32>, vector<1x8x8xf32>, vector<1x8x8xf32> -> vector<1x8x8xf32>
    "tpu.trace_stop"() : () -> ()
    %56 = vector.shape_cast %19 : vector<8x8xf32> to vector<1x8x8xf32>
    %57 = arith.addf %55, %56 : vector<1x8x8xf32>
    %cst_21 = arith.constant dense<0xFF800000> : vector<1x8xf32>
    %58 = vector.multi_reduction <maximumf>, %57, %cst_21 [2] : vector<1x8x8xf32> to vector<1x8xf32>
    %59 = vector.shape_cast %58 : vector<1x8xf32> to vector<1x8x1xf32>
    %60 = vector.broadcast %59 : vector<1x8x1xf32> to vector<1x8x8xf32>
    %61 = arith.subf %57, %60 : vector<1x8x8xf32>
    %62 = math.exp %61 : vector<1x8x8xf32>
    %cst_22 = arith.constant dense<0.000000e+00> : vector<1x8xf32>
    %63 = vector.multi_reduction <add>, %62, %cst_22 [2] : vector<1x8x8xf32> to vector<1x8xf32>
    %64 = vector.shape_cast %63 : vector<1x8xf32> to vector<1x8x1xf32>
    %65 = vector.broadcast %64 : vector<1x8x1xf32> to vector<1x8x8xf32>
    %66 = arith.divf %62, %65 : vector<1x8x8xf32>
    "tpu.trace_start"() <{level = 10 : i32, message = "bts,bsd->btd"}> : () -> ()
    %cst_23 = arith.constant dense<0.000000e+00> : vector<1x8x8xf32>
    %67 = tpu.matmul %66, %53, %cst_23 {dimension_numbers = #tpu.dot_dimension_numbers<[2], [1], [1], [2], [0, 0, 0, 1, 1, 2], [0], [0]>} : vector<1x8x8xf32>, vector<1x8x8xf32>, vector<1x8x8xf32> -> vector<1x8x8xf32>
    "tpu.trace_stop"() : () -> ()
    %c0_24 = arith.constant 0 : index
    %c0_25 = arith.constant 0 : index
    %c16 = arith.constant 16 : index
    %68 = vector.load %arg7[%c0_24, %c0_25, %c16] : memref<1x8x32xf32, #tpu.memory_space<vmem>>, vector<1x8x8xf32>
    tpu.vector_store %arg7[%c0_24, %c0_25, %c16], %67 {strides = array<i32>} : memref<1x8x32xf32, #tpu.memory_space<vmem>>, vector<1x8x8xf32>,
    %69 = vector.extract_strided_slice %7 {offsets = [0, 0, 24], sizes = [1, 8, 8], strides = [1, 1, 1]} : vector<1x8x32xf32> to vector<1x8x8xf32>
    "tpu.trace_start"() <{level = 10 : i32, message = "btd,bsd->bts"}> : () -> ()
    %cst_26 = arith.constant dense<0.000000e+00> : vector<1x8x8xf32>
    %70 = tpu.matmul %69, %52, %cst_26 {dimension_numbers = #tpu.dot_dimension_numbers<[2], [2], [1], [1], [0, 0, 0, 1, 1, 1], [0], [0]>} : vector<1x8x8xf32>, vector<1x8x8xf32>, vector<1x8x8xf32> -> vector<1x8x8xf32>
    "tpu.trace_stop"() : () -> ()
    %71 = vector.shape_cast %19 : vector<8x8xf32> to vector<1x8x8xf32>
    %72 = arith.addf %70, %71 : vector<1x8x8xf32>
    %cst_27 = arith.constant dense<0xFF800000> : vector<1x8xf32>
    %73 = vector.multi_reduction <maximumf>, %72, %cst_27 [2] : vector<1x8x8xf32> to vector<1x8xf32>
    %74 = vector.shape_cast %73 : vector<1x8xf32> to vector<1x8x1xf32>
    %75 = vector.broadcast %74 : vector<1x8x1xf32> to vector<1x8x8xf32>
    %76 = arith.subf %72, %75 : vector<1x8x8xf32>
    %77 = math.exp %76 : vector<1x8x8xf32>
    %cst_28 = arith.constant dense<0.000000e+00> : vector<1x8xf32>
    %78 = vector.multi_reduction <add>, %77, %cst_28 [2] : vector<1x8x8xf32> to vector<1x8xf32>
    %79 = vector.shape_cast %78 : vector<1x8xf32> to vector<1x8x1xf32>
    %80 = vector.broadcast %79 : vector<1x8x1xf32> to vector<1x8x8xf32>
    %81 = arith.divf %77, %80 : vector<1x8x8xf32>
    "tpu.trace_start"() <{level = 10 : i32, message = "bts,bsd->btd"}> : () -> ()
    %cst_29 = arith.constant dense<0.000000e+00> : vector<1x8x8xf32>
    %82 = tpu.matmul %81, %53, %cst_29 {dimension_numbers = #tpu.dot_dimension_numbers<[2], [1], [1], [2], [0, 0, 0, 1, 1, 2], [0], [0]>} : vector<1x8x8xf32>, vector<1x8x8xf32>, vector<1x8x8xf32> -> vector<1x8x8xf32>
    "tpu.trace_stop"() : () -> ()
    %c0_30 = arith.constant 0 : index
    %c0_31 = arith.constant 0 : index
    %c24 = arith.constant 24 : index
    %83 = vector.load %arg7[%c0_30, %c0_31, %c24] : memref<1x8x32xf32, #tpu.memory_space<vmem>>, vector<1x8x8xf32>
    tpu.vector_store %arg7[%c0_30, %c0_31, %c24], %82 {strides = array<i32>} : memref<1x8x32xf32, #tpu.memory_space<vmem>>, vector<1x8x8xf32>,
    %c0_32 = arith.constant 0 : index
    %c0_33 = arith.constant 0 : index
    %c0_34 = arith.constant 0 : index
    %84 = vector.load %arg7[%c0_32, %c0_33, %c0_34] : memref<1x8x32xf32, #tpu.memory_space<vmem>>, vector<1x8x32xf32>
    %85 = vector.shape_cast %84 : vector<1x8x32xf32> to vector<8x32xf32>
    %c0_35 = arith.constant 0 : index
    %c0_36 = arith.constant 0 : index
    %86 = vector.load %arg3[%c0_35, %c0_36] : memref<32x32xf32, #tpu.memory_space<vmem>>, vector<32x32xf32>
    %cst_37 = arith.constant dense<0.000000e+00> : vector<8x32xf32>
    %87 = tpu.matmul %85, %86, %cst_37 {dimension_numbers = #tpu.dot_dimension_numbers<[1], [0], [0], [1], [0, 0, 1, 1], [], []>} : vector<8x32xf32>, vector<32x32xf32>, vector<8x32xf32> -> vector<8x32xf32>
    %c0_38 = arith.constant 0 : index
    %c0_39 = arith.constant 0 : index
    %88 = vector.load %arg5[%c0_38, %c0_39] : memref<1x32xf32, #tpu.memory_space<vmem>>, vector<1x32xf32>
    %89 = vector.broadcast %88 : vector<1x32xf32> to vector<8x32xf32>
    %90 = arith.addf %87, %89 : vector<8x32xf32>
    %c0_40 = arith.constant 0 : index
    %c0_41 = arith.constant 0 : index
    %91 = vector.load %arg6[%c0_40, %c0_41] : memref<8x32xf32, #tpu.memory_space<vmem>>, vector<8x32xf32>
    tpu.vector_store %arg6[%c0_40, %c0_41], %90 {strides = array<i32>} : memref<8x32xf32, #tpu.memory_space<vmem>>, vector<8x32xf32>,
    return
  }
  func.func @transform_0(%arg0: i32) -> (i32, i32) {
    %c0_i32 = arith.constant 0 : i32
    %c0_i32_0 = arith.constant 0 : i32
    return %arg0, %c0_i32 : i32, i32
  }
  func.func @transform_1(%arg0: i32) -> (i32, i32) {
    %c0_i32 = arith.constant 0 : i32
    %c0_i32_0 = arith.constant 0 : i32
    %c0_i32_1 = arith.constant 0 : i32
    return %c0_i32, %c0_i32_0 : i32, i32
  }
  func.func @transform_2(%arg0: i32) -> (i32, i32) {
    %c0_i32 = arith.constant 0 : i32
    %c0_i32_0 = arith.constant 0 : i32
    %c0_i32_1 = arith.constant 0 : i32
    return %c0_i32, %c0_i32_0 : i32, i32
  }
  func.func @transform_3(%arg0: i32) -> (i32, i32) {
    %c0_i32 = arith.constant 0 : i32
    %c0_i32_0 = arith.constant 0 : i32
    %c0_i32_1 = arith.constant 0 : i32
    return %c0_i32, %c0_i32_0 : i32, i32
  }
  func.func @transform_4(%arg0: i32) -> (i32, i32) {
    %c0_i32 = arith.constant 0 : i32
    %c0_i32_0 = arith.constant 0 : i32
    %c0_i32_1 = arith.constant 0 : i32
    return %c0_i32, %c0_i32_0 : i32, i32
  }
  func.func @transform_5(%arg0: i32) -> (i32, i32) {
    %c0_i32 = arith.constant 0 : i32
    %c0_i32_0 = arith.constant 0 : i32
    return %arg0, %c0_i32 : i32, i32
  }
}

</mosaic_0001>

<llo_original>
// kernel: tpu_custom_call.1
$region0: #{tpu_custom_call.1}
  #allocation0 [shape = 'u32[]', space=smem, size = 0x4, offset = 0x4, fixed_abs, tag = 'smem constant byte address 0x4 - core index']
  #allocation1 [shape = 'u32[144,128]{1,0:T(1,128)}', space=vmem, size = 0x12000, scoped, tag = 'internal scratch']
  #allocation2 [shape = 'f32[1,8,32]{2,1,0:T(8,128)}', space=vmem, size = 0x1000, scoped, tag = 'scratch operand']
  %s0 = inlined_call_operand.hbm [shape: f32[16,32], index: 0, kind: input, shape index: {}]
  %s1 = inlined_call_operand.hbm [shape: f32[32,64], index: 1, kind: input, shape index: {}]
  %s2 = inlined_call_operand.hbm [shape: f32[32,32], index: 2, kind: input, shape index: {}]
  %s3 = inlined_call_operand.vmem [shape: f32[1,64], index: 3, kind: input, shape index: {}]
  %s4 = inlined_call_operand.vmem [shape: f32[1,32], index: 4, kind: input, shape index: {}]
  %s5 = inlined_call_operand.hbm [shape: f32[16,32], index: 5, kind: output, shape index: {}]
  %s6 = sld [smem:[#allocation0]]
  $region65: #{tpu_custom_call.1} parent=0
    _
  %s8 = ssub.s32 1, %s6
  %s9 = scalar_select 0, %s8, %s6
  $region1: #{tpu_custom_call.1} parent=0
    #allocation3 [shape = 'u8[8192]{0}', space=vmem, size = 0x2000, scoped, tag = 'input window, operand 0']
    #allocation4 [shape = 's32[2]{0}', space=sflag, size = 0x8, scoped, tag = 'scoped memory for tpu_custom_call.1']
    #allocation5 [shape = 's32[2]{0}', space=sflag, size = 0x8, scoped, tag = 'scoped memory for tpu_custom_call.1']
    #allocation6 [shape = 'u8[16384]{0}', space=vmem, size = 0x4000, scoped, tag = 'input window, operand 1, single buffered']
    #allocation7 [shape = 's32[1]{0}', space=sflag, size = 0x4, scoped, tag = 'scoped memory for tpu_custom_call.1']
    #allocation8 [shape = 'u8[16384]{0}', space=vmem, size = 0x4000, scoped, tag = 'input window, operand 2, single buffered']
    #allocation9 [shape = 'u8[8192]{0}', space=vmem, size = 0x2000, scoped, tag = 'output window, operand 0']
    %10 = vsyncpa [#allocation4], 0
    %s11 = scalar_lea.sflag [#allocation4], 1
    %12 = vsyncpa %s11, 0
    %13 = vsyncpa [#allocation7], 0
    %14 = vsyncpa [#allocation5], 0
    %s15 = scalar_lea.sflag [#allocation5], 1
    %16 = vsyncpa %s15, 0
    loop: start=0, step=1, limit=4
    $region2: #{tpu_custom_call.1} parent=1 // loop_pre_header
      _
    $region3: #{tpu_custom_call.1} parent=1 // loop_header
      %s18 = sphi 0, %s22
      %p19 = scmp.ge.s32.totalorder %s18, 4
      %s28 = sphi 0, %s30
      %s31 = sphi 0, %s28
      %s32 = sphi 0, %s31
      %s48 = sphi 0, %s32
      %s52 = sphi 0, %s52
      %s54 = sphi 0, %s52
      %s55 = sphi 0, %s54
      %s69 = sphi 0, %s55
      %s73 = sphi 0, %s73
      %s75 = sphi 0, %s73
      %s76 = sphi 0, %s75
      %s90 = sphi 0, %s76
      %s94 = sphi 0, %s94
      %s96 = sphi 0, %s94
      %s97 = sphi 0, %s96
      %s111 = sphi 0, %s97
      %s115 = sphi 0, %s115
      %s117 = sphi 0, %s115
      %s118 = sphi 0, %s117
      %s132 = sphi 0, %s118
      %s138 = sphi 0, %s140
      %s141 = sphi 0, %s138
      %s142 = sphi 0, %s141
      %s158 = sphi 0, %s142
    $region4: #{tpu_custom_call.1} parent=1 // loop_header_branch
      %21 = sbr.rel (%p19) target = $region8
    $region5: #{tpu_custom_call.1} parent=1 // loop_body
      %s23 = ssub.s32 %s18, 1
      %s24 = ssub.s32 %s18, 2
      %s25 = sadd.s32 %s18, 1
      %s26 = ssub.s32 %s18, %s25
      %p27 = scmp.eq.s32.totalorder %s26, 0
      %s29 = sadd.s32 %s28, 1
      %s30 = scalar_select %p27, %s28, %s29
      %p33 = pneg %p27
      %p34 = scmp.eq.s32.totalorder %s18, 1
      %p35 = por %p33, %p34
      %p36 = scmp.ne.s32.totalorder %s28, %s31
      %p37 = scmp.eq.s32.totalorder %s18, 0
      %p38 = por %p36, %p37
      %p39 = scmp.ne.s32.totalorder %s28, %s31
      %p40 = scmp.eq.s32.totalorder %s23, 1
      %p41 = por %p39, %p40
      %p42 = scmp.ne.s32.totalorder %s31, %s32
      %p43 = scmp.eq.s32.totalorder %s23, 0
      %p44 = por %p42, %p43
      %p45 = scmp.ne.s32.totalorder %s31, %s32
      %p46 = scmp.eq.s32.totalorder %s24, 1
      %p47 = por %p45, %p46
      %p49 = scmp.ne.s32.totalorder %s32, %s48
      %p50 = scmp.eq.s32.totalorder %s24, 0
      %p51 = por %p49, %p50
      %s53 = sadd.s32 %s52, 1
      %p56 = scmp.eq.s32.totalorder %s18, 1
      %p57 = scmp.ne.s32.totalorder %s52, %s54
      %p58 = scmp.eq.s32.totalorder %s18, 0
      %p59 = por %p57, %p58
      %p60 = scmp.ne.s32.totalorder %s52, %s54
      %p61 = scmp.eq.s32.totalorder %s23, 1
      %p62 = por %p60, %p61
      %p63 = scmp.ne.s32.totalorder %s54, %s55
      %p64 = scmp.eq.s32.totalorder %s23, 0
      %p65 = por %p63, %p64
      %p66 = scmp.ne.s32.totalorder %s54, %s55
      %p67 = scmp.eq.s32.totalorder %s24, 1
      %p68 = por %p66, %p67
      %p70 = scmp.ne.s32.totalorder %s55, %s69
      %p71 = scmp.eq.s32.totalorder %s24, 0
      %p72 = por %p70, %p71
      %s74 = sadd.s32 %s73, 1
      %p77 = scmp.eq.s32.totalorder %s18, 1
      %p78 = scmp.ne.s32.totalorder %s73, %s75
      %p79 = scmp.eq.s32.totalorder %s18, 0
      %p80 = por %p78, %p79
      %p81 = scmp.ne.s32.totalorder %s73, %s75
      %p82 = scmp.eq.s32.totalorder %s23, 1
      %p83 = por %p81, %p82
      %p84 = scmp.ne.s32.totalorder %s75, %s76
      %p85 = scmp.eq.s32.totalorder %s23, 0
      %p86 = por %p84, %p85
      %p87 = scmp.ne.s32.totalorder %s75, %s76
      %p88 = scmp.eq.s32.totalorder %s24, 1
      %p89 = por %p87, %p88
      %p91 = scmp.ne.s32.totalorder %s76, %s90
      %p92 = scmp.eq.s32.totalorder %s24, 0
      %p93 = por %p91, %p92
      %s95 = sadd.s32 %s94, 1
      %p98 = scmp.eq.s32.totalorder %s18, 1
      %p99 = scmp.ne.s32.totalorder %s94, %s96
      %p100 = scmp.eq.s32.totalorder %s18, 0
      %p101 = por %p99, %p100
      %p102 = scmp.ne.s32.totalorder %s94, %s96
      %p103 = scmp.eq.s32.totalorder %s23, 1
      %p104 = por %p102, %p103
      %p105 = scmp.ne.s32.totalorder %s96, %s97
      %p106 = scmp.eq.s32.totalorder %s23, 0
      %p107 = por %p105, %p106
      %p108 = scmp.ne.s32.totalorder %s96, %s97
      %p109 = scmp.eq.s32.totalorder %s24, 1
      %p110 = por %p108, %p109
      %p112 = scmp.ne.s32.totalorder %s97, %s111
      %p113 = scmp.eq.s32.totalorder %s24, 0
      %p114 = por %p112, %p113
      %s116 = sadd.s32 %s115, 1
      %p119 = scmp.eq.s32.totalorder %s18, 1
      %p120 = scmp.ne.s32.totalorder %s115, %s117
      %p121 = scmp.eq.s32.totalorder %s18, 0
      %p122 = por %p120, %p121
      %p123 = scmp.ne.s32.totalorder %s115, %s117
      %p124 = scmp.eq.s32.totalorder %s23, 1
      %p125 = por %p123, %p124
      %p126 = scmp.ne.s32.totalorder %s117, %s118
      %p127 = scmp.eq.s32.totalorder %s23, 0
      %p128 = por %p126, %p127
      %p129 = scmp.ne.s32.totalorder %s117, %s118
      %p130 = scmp.eq.s32.totalorder %s24, 1
      %p131 = por %p129, %p130
      %p133 = scmp.ne.s32.totalorder %s118, %s132
      %p134 = scmp.eq.s32.totalorder %s24, 0
      %p135 = por %p133, %p134
      %s136 = ssub.s32 %s18, %s25
      %p137 = scmp.eq.s32.totalorder %s136, 0
      %s139 = sadd.s32 %s138, 1
      %s140 = scalar_select %p137, %s138, %s139
      %p143 = pneg %p137
      %p144 = scmp.eq.s32.totalorder %s18, 1
      %p145 = por %p143, %p144
      %p146 = scmp.ne.s32.totalorder %s138, %s141
      %p147 = scmp.eq.s32.totalorder %s18, 0
      %p148 = por %p146, %p147
      %p149 = scmp.ne.s32.totalorder %s138, %s141
      %p150 = scmp.eq.s32.totalorder %s23, 1
      %p151 = por %p149, %p150
      %p152 = scmp.ne.s32.totalorder %s141, %s142
      %p153 = scmp.eq.s32.totalorder %s23, 0
      %p154 = por %p152, %p153
      %p155 = scmp.ne.s32.totalorder %s141, %s142
      %p156 = scmp.eq.s32.totalorder %s24, 1
      %p157 = por %p155, %p156
      %p159 = scmp.ne.s32.totalorder %s142, %s158
      %p160 = scmp.eq.s32.totalorder %s24, 0
      %p161 = por %p159, %p160
      %p162 = scmp.le.s32.totalorder 1, %s18
      %p163 = scmp.lt.s32.totalorder %s18, 3
      %p164 = pnand %p162, %p163
      %p165 = pneg %p164
      // Predicated region
      $region9: #{tpu_custom_call.1} parent=5 // pred_check
        _
      $region10: #{tpu_custom_call.1} parent=5 // pred_check_branch
        %167 = sbr.rel (%p164) target = $region12
      $region11: #{tpu_custom_call.1} parent=5 // pred_region
        %s168 = ssub.s32 %s18, 1
        // Predicated region
        $region13: #{tpu_custom_call.1} parent=11 // pred_check
          %p169 = pneg %p65
        $region14: #{tpu_custom_call.1} parent=11 // pred_check_branch
          %171 = sbr.rel (%p169) target = $region16
        $region15: #{tpu_custom_call.1} parent=11 // pred_region
          %s173 = ssub.s32 512, 512
          %174 = vsyncadd [#allocation7], %s173
          %s175 = sshll.u32 [#allocation6], 4
          %s176 = int_to_ptr.vmem [resolvable:$true] %s175
          %181 = dma.hbm_to_vmem [thread:$0]  %s1, 512, %s176, [#allocation7], 128, 128, 8
        $region16: #{tpu_custom_call.1} parent=11 // pred_fallthru
          _
        // Predicated region
        $region17: #{tpu_custom_call.1} parent=11 // pred_check
          %p182 = pneg %p86
        $region18: #{tpu_custom_call.1} parent=11 // pred_check_branch
          %184 = sbr.rel (%p182) target = $region20
        $region19: #{tpu_custom_call.1} parent=11 // pred_region
          %s186 = ssub.s32 512, 512
          %187 = vsyncadd [#allocation7], %s186
          %s188 = sshll.u32 [#allocation8], 4
          %s189 = int_to_ptr.vmem [resolvable:$true] %s188
          %194 = dma.hbm_to_vmem [thread:$0]  %s2, 512, %s189, [#allocation7], 128, 128, 8
        $region20: #{tpu_custom_call.1} parent=11 // pred_fallthru
          _
        // Predicated region
        $region21: #{tpu_custom_call.1} parent=11 // pred_check
          %p195 = pneg %p107
        $region22: #{tpu_custom_call.1} parent=11 // pred_check_branch
          %197 = sbr.rel (%p195) target = $region24
        $region23: #{tpu_custom_call.1} parent=11 // pred_region
          _
        $region24: #{tpu_custom_call.1} parent=11 // pred_fallthru
          _
        // Predicated region
        $region25: #{tpu_custom_call.1} parent=11 // pred_check
          %p198 = pneg %p128
        $region26: #{tpu_custom_call.1} parent=11 // pred_check_branch
          %200 = sbr.rel (%p198) target = $region28
        $region27: #{tpu_custom_call.1} parent=11 // pred_region
          _
        $region28: #{tpu_custom_call.1} parent=11 // pred_fallthru
          _
      $region12: #{tpu_custom_call.1} parent=5 // pred_fallthru
        _
      %p201 = scmp.lt.s32.totalorder %s18, 2
      // Predicated region
      $region29: #{tpu_custom_call.1} parent=5 // pred_check
        %p202 = pneg %p201
      $region30: #{tpu_custom_call.1} parent=5 // pred_check_branch
        %204 = sbr.rel (%p202) target = $region32
      $region31: #{tpu_custom_call.1} parent=5 // pred_region
        // Predicated region
        $region33: #{tpu_custom_call.1} parent=31 // pred_check
          %p205 = pneg %p38
        $region34: #{tpu_custom_call.1} parent=31 // pred_check_branch
          %207 = sbr.rel (%p205) target = $region36
        $region35: #{tpu_custom_call.1} parent=31 // pred_region
          %s208 = sand.u32 %s28, 1
          %s209 = scalar_lea.sflag [#allocation4], %s208
          %s210 = sand.u32 %s28, 1
          %s211 = smul.addr %s210, 8
          %s212 = scalar_lea.vmem [#allocation3], %s211
          %s214 = ssub.s32 128, 128
          %215 = vsyncadd %s209, %s214
          %s216 = smul.addr %s18, 128
          %s217 = scalar_lea.hbm %s0, %s216
          %s219 = sshll.u32 %s212, 4
          %s220 = int_to_ptr.vmem [resolvable:$true] %s219
          %222 = dma.hbm_to_vmem [thread:$0]  %s217, 128, %s220, %s209
        $region36: #{tpu_custom_call.1} parent=31 // pred_fallthru
          _
      $region32: #{tpu_custom_call.1} parent=5 // pred_fallthru
        _
      %p223 = scmp.le.s32.totalorder 1, %s18
      %p224 = scmp.lt.s32.totalorder %s18, 3
      %p225 = pnand %p223, %p224
      %p226 = pneg %p225
      // Predicated region
      $region37: #{tpu_custom_call.1} parent=5 // pred_check
        _
      $region38: #{tpu_custom_call.1} parent=5 // pred_check_branch
        %228 = sbr.rel (%p225) target = $region40
      $region39: #{tpu_custom_call.1} parent=5 // pred_region
        %s229 = ssub.s32 %s18, 1
        %s230 = sand.u32 %s31, 1
        %s231 = scalar_lea.sflag [#allocation4], %s230
        %s232 = sand.u32 %s31, 1
        %s233 = smul.addr %s232, 8
        %s234 = scalar_lea.vmem [#allocation3], %s233
        // Predicated region
        $region41: #{tpu_custom_call.1} parent=39 // pred_check
          %p235 = pneg %p44
        $region42: #{tpu_custom_call.1} parent=39 // pred_check_branch
          %237 = sbr.rel (%p235) target = $region44
        $region43: #{tpu_custom_call.1} parent=39 // pred_region
          %238 = dma.done %s231, 128
        $region44: #{tpu_custom_call.1} parent=39 // pred_fallthru
          _
        // Predicated region
        $region45: #{tpu_custom_call.1} parent=39 // pred_check
          %p239 = pneg %p65
        $region46: #{tpu_custom_call.1} parent=39 // pred_check_branch
          %241 = sbr.rel (%p239) target = $region48
        $region47: #{tpu_custom_call.1} parent=39 // pred_region
          %242 = dma.done [#allocation7], 512
        $region48: #{tpu_custom_call.1} parent=39 // pred_fallthru
          _
        // Predicated region
        $region49: #{tpu_custom_call.1} parent=39 // pred_check
          %p243 = pneg %p86
        $region50: #{tpu_custom_call.1} parent=39 // pred_check_branch
          %245 = sbr.rel (%p243) target = $region52
        $region51: #{tpu_custom_call.1} parent=39 // pred_region
          %246 = dma.done [#allocation7], 512
        $region52: #{tpu_custom_call.1} parent=39 // pred_fallthru
          _
        %s247 = sand.u32 %s31, 1
        %s248 = scalar_lea.sflag [#allocation4], %s247
        %s249 = sand.u32 %s31, 1
        %s250 = smul.addr %s249, 8
        %s251 = scalar_lea.vmem [#allocation3], %s250
        %p252 = pneg %p44
        %p253 = pneg %p41
        %p254 = pneg %p65
        %p255 = pneg %p62
        %p256 = pneg %p86
        %p257 = pneg %p83
        %p258 = pneg %p107
        %p259 = pneg %p104
        %p260 = pneg %p128
        %p261 = pneg %p125
        %p262 = pneg %p154
        %p263 = pneg %p151
        %s264 = sand.u32 %s141, 1
        %s265 = scalar_lea.sflag [#allocation5], %s264
        %s266 = sand.u32 %s141, 1
        %s267 = smul.addr %s266, 8
        %s268 = scalar_lea.vmem [#allocation9], %s267
        %v269 = vld [vmem:[%s234] sm:$0xff]
        %v270 = vld [vmem:[#allocation6] sm:$0xff]
        %v271 = vld [vmem:[#allocation6 + $0x8] sm:$0xff]
        %v272 = vld [vmem:[#allocation6 + $0x10] sm:$0xff]
        %v273 = vld [vmem:[#allocation6 + $0x18] sm:$0xff]
        %v274 = vld [vmem:[%s3] sm:$0x1]
        %v276 = vlaneseq
        %v277 = vshrl.u32 %v276, 7
        %v278 = vsub.s32 0, %v277
        %v279 = vrot.slane %v274, %v278
        %vm281 = vcmask 261120
        %v283 = vsel %vm281, %v269, 0
        %285 = vmatprep.subr.mxu0 0.0
        %286 = vmatpush1.msra.mxu0 %v270
        %287 = vmatprep.subr.mxu0 0.0
        %288 = vmatpush1.msra.mxu0 %v271
        %289 = vmatprep.subr.mxu0 0.0
        %290 = vmatpush1.msra.mxu0 %v272
        %291 = vmatprep.subr.mxu0 0.0
        %292 = vmatpush1.msra.mxu0 %v273
        %293 = vmatprep.subr.mxu0 0.0
        %294 = vmatpush1.msra.mxu0 0.0
        %295 = vmatprep.subr.mxu0 0.0
        %296 = vmatpush1.msra.mxu0 0.0
        %297 = vmatprep.subr.mxu0 0.0
        %298 = vmatpush1.msra.mxu0 0.0
        %299 = vmatprep.subr.mxu0 0.0
        %300 = vmatpush1.msra.mxu0 0.0
        %301 = vmatprep.subr.mxu0 0.0
        %302 = vmatpush1.msra.mxu0 0.0
        %303 = vmatprep.subr.mxu0 0.0
        %304 = vmatpush1.msra.mxu0 0.0
        %305 = vmatprep.subr.mxu0 0.0
        %306 = vmatpush1.msra.mxu0 0.0
        %307 = vmatprep.subr.mxu0 0.0
        %308 = vmatpush1.msra.mxu0 0.0
        %309 = vmatprep.subr.mxu0 0.0
        %310 = vmatpush1.msra.mxu0 0.0
        %311 = vmatprep.subr.mxu0 0.0
        %312 = vmatpush1.msra.mxu0 0.0
        %313 = vmatprep.subr.mxu0 0.0
        %314 = vmatpush1.msra.mxu0 0.0
        %315 = vmatprep.subr.mxu0 0.0
        %316 = vmatpush1.msra.mxu0 0.0
        %317 = vmatprep.subr.mxu0 0.0
        %318 = vmatpush1.msra.mxu0 0.0
        %319 = vmatprep.subr.mxu0 0.0
        %320 = vmatpush1.msra.mxu0 0.0
        %321 = vmatprep.subr.mxu0 0.0
        %322 = vmatpush1.msra.mxu0 0.0
        %323 = vmatprep.subr.mxu0 0.0
        %324 = vmatpush1.msra.mxu0 0.0
        %325 = vmatprep.subr.mxu0 0.0
        %326 = vmatpush1.msra.mxu0 0.0
        %327 = vmatprep.subr.mxu0 0.0
        %328 = vmatpush1.msra.mxu0 0.0
        %329 = vmatprep.subr.mxu0 0.0
        %330 = vmatpush1.msra.mxu0 0.0
        %331 = vmatprep.subr.mxu0 0.0
        %332 = vmatpush1.msra.mxu0 0.0
        %333 = vmatprep.subr.mxu0 0.0
        %334 = vmatpush1.msra.mxu0 0.0
        %335 = vmatprep.subr.mxu0 0.0
        %336 = vmatpush1.msra.mxu0 0.0
        %337 = vmatprep.subr.mxu0 0.0
        %338 = vmatpush1.msra.mxu0 0.0
        %339 = vmatprep.subr.mxu0 0.0
        %340 = vmatpush1.msra.mxu0 0.0
        %341 = vmatprep.subr.mxu0 0.0
        %342 = vmatpush1.msra.mxu0 0.0
        %343 = vmatprep.subr.mxu0 0.0
        %344 = vmatpush1.msra.mxu0 0.0
        %345 = vmatprep.subr.mxu0 0.0
        %346 = vmatpush1.msra.mxu0 0.0
        %347 = vmatprep.subr.mxu0 0.0
        %348 = vmatpush1.msra.mxu0 0.0
        %349 = vmatprep.mubr.f32.mxu0 0.0
        %350 = vmatmul.mubr.f32.gmra.mrb[0].mxu0 %v283
        %v351 = vpop.f32.mrb[0].mxu0
        %v352 = vadd.f32 %v279, %v351
        %v353 = vpop.f32.mrb[0].mxu0
        %354 = vdwg.mxu0
        %v355 = vlaneseq
        %v356 = vshrl.u32 %v355, 7
        %v357 = vlaneseq
        %v358 = vand.u32 %v357, 127
        %vm359 = vcmp.le.s32.totalorder %v358, %v356
        %v360 = vsel %vm359, 0.0, -1e+30
        %362 = vrot.lane.b32.xlu0 %v352, 96
        %v363 = vpop.permute.xlu0 %362
        %vm364 = vcmask 64512
        %v365 = vsel %vm364, %v352, 0
        %v367 = vsel %vm364, %v363, 0
        %369 = vmatprep.subr.mxu0 0.0
        %370 = vmatpush1.xpose.msra.mxu0 %v367
        %371 = vmatprep.subr.mxu0 0.0
        %372 = vmatpush1.xpose.msra.mxu0 0.0
        %373 = vmatprep.subr.mxu0 0.0
        %374 = vmatpush1.xpose.msra.mxu0 0.0
        %375 = vmatprep.subr.mxu0 0.0
        %376 = vmatpush1.xpose.msra.mxu0 0.0
        %377 = vmatprep.subr.mxu0 0.0
        %378 = vmatpush1.xpose.msra.mxu0 0.0
        %379 = vmatprep.subr.mxu0 0.0
        %380 = vmatpush1.xpose.msra.mxu0 0.0
        %381 = vmatprep.subr.mxu0 0.0
        %382 = vmatpush1.xpose.msra.mxu0 0.0
        %383 = vmatprep.subr.mxu0 0.0
        %384 = vmatpush1.xpose.msra.mxu0 0.0
        %385 = vmatprep.subr.mxu0 0.0
        %386 = vmatpush1.xpose.msra.mxu0 0.0
        %387 = vmatprep.subr.mxu0 0.0
        %388 = vmatpush1.xpose.msra.mxu0 0.0
        %389 = vmatprep.subr.mxu0 0.0
        %390 = vmatpush1.xpose.msra.mxu0 0.0
        %391 = vmatprep.subr.mxu0 0.0
        %392 = vmatpush1.xpose.msra.mxu0 0.0
        %393 = vmatprep.subr.mxu0 0.0
        %394 = vmatpush1.xpose.msra.mxu0 0.0
        %395 = vmatprep.subr.mxu0 0.0
        %396 = vmatpush1.xpose.msra.mxu0 0.0
        %397 = vmatprep.subr.mxu0 0.0
        %398 = vmatpush1.xpose.msra.mxu0 0.0
        %399 = vmatprep.subr.mxu0 0.0
        %400 = vmatpush1.xpose.msra.mxu0 0.0
        %401 = vmatprep.subr.mxu0 0.0
        %402 = vmatpush1.xpose.msra.mxu0 0.0
        %403 = vmatprep.subr.mxu0 0.0
        %404 = vmatpush1.xpose.msra.mxu0 0.0
        %405 = vmatprep.subr.mxu0 0.0
        %406 = vmatpush1.xpose.msra.mxu0 0.0
        %407 = vmatprep.subr.mxu0 0.0
        %408 = vmatpush1.xpose.msra.mxu0 0.0
        %409 = vmatprep.subr.mxu0 0.0
        %410 = vmatpush1.xpose.msra.mxu0 0.0
        %411 = vmatprep.subr.mxu0 0.0
        %412 = vmatpush1.xpose.msra.mxu0 0.0
        %413 = vmatprep.subr.mxu0 0.0
        %414 = vmatpush1.xpose.msra.mxu0 0.0
        %415 = vmatprep.subr.mxu0 0.0
        %416 = vmatpush1.xpose.msra.mxu0 0.0
        %417 = vmatprep.subr.mxu0 0.0
        %418 = vmatpush1.xpose.msra.mxu0 0.0
        %419 = vmatprep.subr.mxu0 0.0
        %420 = vmatpush1.xpose.msra.mxu0 0.0
        %421 = vmatprep.subr.mxu0 0.0
        %422 = vmatpush1.xpose.msra.mxu0 0.0
        %423 = vmatprep.subr.mxu0 0.0
        %424 = vmatpush1.xpose.msra.mxu0 0.0
        %425 = vmatprep.subr.mxu0 0.0
        %426 = vmatpush1.xpose.msra.mxu0 0.0
        %427 = vmatprep.subr.mxu0 0.0
        %428 = vmatpush1.xpose.msra.mxu0 0.0
        %429 = vmatprep.subr.mxu0 0.0
        %430 = vmatpush1.xpose.msra.mxu0 0.0
        %431 = vmatprep.subr.mxu0 0.0
        %432 = vmatpush1.xpose.msra.mxu0 0.0
        %433 = vmatprep.mubr.f32.mxu0 0.0
        %434 = vmatmul.mubr.f32.gmra.mrb[0].mxu0 %v365
        %v435 = vpop.f32.mrb[0].mxu0
        %v436 = vadd.f32 %v360, %v435
        %v437 = vpop.f32.mrb[0].mxu0
        %438 = vdwg.mxu0
        %v439 = vsel %vm364, %v436, -inf
        %440 = vmax.xlane.f32.xlu0 %v439
        %v441 = vpop.xlane.xlu0 %440
        %v442 = vsub.f32 %v436, %v441
        %v443 = vmul.f32 %v442, 1.442695
        %v444 = vpow.pop %v443
        %v445 = vsel %vm364, %v444, 0.0
        %446 = vadd.xlane.f32.xlu0 %v445
        %v447 = vpop.xlane.xlu0 %446
        %v448 = vrcp.pop %v447
        %v449 = vmul.f32 %v444, %v448
        %450 = vrot.lane.b32.xlu0 %v352, 80
        %v451 = vpop.permute.xlu0 %450
        %v454 = vsel %vm364, %v449, 0
        %456 = vmatprep.subr.mxu0 0.0
        %457 = vmatpush1.msra.mxu0 %v451
        %458 = vmatprep.subr.mxu0 0.0
        %459 = vmatpush1.msra.mxu0 0.0
        %460 = vmatprep.subr.mxu0 0.0
        %461 = vmatpush1.msra.mxu0 0.0
        %462 = vmatprep.subr.mxu0 0.0
        %463 = vmatpush1.msra.mxu0 0.0
        %464 = vmatprep.subr.mxu0 0.0
        %465 = vmatpush1.msra.mxu0 0.0
        %466 = vmatprep.subr.mxu0 0.0
        %467 = vmatpush1.msra.mxu0 0.0
        %468 = vmatprep.subr.mxu0 0.0
        %469 = vmatpush1.msra.mxu0 0.0
        %470 = vmatprep.subr.mxu0 0.0
        %471 = vmatpush1.msra.mxu0 0.0
        %472 = vmatprep.subr.mxu0 0.0
        %473 = vmatpush1.msra.mxu0 0.0
        %474 = vmatprep.subr.mxu0 0.0
        %475 = vmatpush1.msra.mxu0 0.0
        %476 = vmatprep.subr.mxu0 0.0
        %477 = vmatpush1.msra.mxu0 0.0
        %478 = vmatprep.subr.mxu0 0.0
        %479 = vmatpush1.msra.mxu0 0.0
        %480 = vmatprep.subr.mxu0 0.0
        %481 = vmatpush1.msra.mxu0 0.0
        %482 = vmatprep.subr.mxu0 0.0
        %483 = vmatpush1.msra.mxu0 0.0
        %484 = vmatprep.subr.mxu0 0.0
        %485 = vmatpush1.msra.mxu0 0.0
        %486 = vmatprep.subr.mxu0 0.0
        %487 = vmatpush1.msra.mxu0 0.0
        %488 = vmatprep.subr.mxu0 0.0
        %489 = vmatpush1.msra.mxu0 0.0
        %490 = vmatprep.subr.mxu0 0.0
        %491 = vmatpush1.msra.mxu0 0.0
        %492 = vmatprep.subr.mxu0 0.0
        %493 = vmatpush1.msra.mxu0 0.0
        %494 = vmatprep.subr.mxu0 0.0
        %495 = vmatpush1.msra.mxu0 0.0
        %496 = vmatprep.subr.mxu0 0.0
        %497 = vmatpush1.msra.mxu0 0.0
        %498 = vmatprep.subr.mxu0 0.0
        %499 = vmatpush1.msra.mxu0 0.0
        %500 = vmatprep.subr.mxu0 0.0
        %501 = vmatpush1.msra.mxu0 0.0
        %502 = vmatprep.subr.mxu0 0.0
        %503 = vmatpush1.msra.mxu0 0.0
        %504 = vmatprep.subr.mxu0 0.0
        %505 = vmatpush1.msra.mxu0 0.0
        %506 = vmatprep.subr.mxu0 0.0
        %507 = vmatpush1.msra.mxu0 0.0
        %508 = vmatprep.subr.mxu0 0.0
        %509 = vmatpush1.msra.mxu0 0.0
        %510 = vmatprep.subr.mxu0 0.0
        %511 = vmatpush1.msra.mxu0 0.0
        %512 = vmatprep.subr.mxu0 0.0
        %513 = vmatpush1.msra.mxu0 0.0
        %514 = vmatprep.subr.mxu0 0.0
        %515 = vmatpush1.msra.mxu0 0.0
        %516 = vmatprep.subr.mxu0 0.0
        %517 = vmatpush1.msra.mxu0 0.0
        %518 = vmatprep.subr.mxu0 0.0
        %519 = vmatpush1.msra.mxu0 0.0
        %520 = vmatprep.mubr.f32.mxu0 0.0
        %521 = vmatmul.mubr.f32.gmra.mrb[0].mxu0 %v454
        %v522 = vpop.f32.mrb[0].mxu0
        %v523 = vadd.f32 0.0, %v522
        %v524 = vpop.f32.mrb[0].mxu0
        %525 = vdwg.mxu0
        %526 = vst.msk [vmem:[#allocation2] sm:$0xff] %vm364, %v523
        %527 = vrot.lane.b32.xlu0 %v352, 120
        %v528 = vpop.permute.xlu0 %527
        %v529 = vsel %vm364, %v528, 0
        %531 = vmatprep.subr.mxu0 0.0
        %532 = vmatpush1.xpose.msra.mxu0 %v367
        %533 = vmatprep.subr.mxu0 0.0
        %534 = vmatpush1.xpose.msra.mxu0 0.0
        %535 = vmatprep.subr.mxu0 0.0
        %536 = vmatpush1.xpose.msra.mxu0 0.0
        %537 = vmatprep.subr.mxu0 0.0
        %538 = vmatpush1.xpose.msra.mxu0 0.0
        %539 = vmatprep.subr.mxu0 0.0
        %540 = vmatpush1.xpose.msra.mxu0 0.0
        %541 = vmatprep.subr.mxu0 0.0
        %542 = vmatpush1.xpose.msra.mxu0 0.0
        %543 = vmatprep.subr.mxu0 0.0
        %544 = vmatpush1.xpose.msra.mxu0 0.0
        %545 = vmatprep.subr.mxu0 0.0
        %546 = vmatpush1.xpose.msra.mxu0 0.0
        %547 = vmatprep.subr.mxu0 0.0
        %548 = vmatpush1.xpose.msra.mxu0 0.0
        %549 = vmatprep.subr.mxu0 0.0
        %550 = vmatpush1.xpose.msra.mxu0 0.0
        %551 = vmatprep.subr.mxu0 0.0
        %552 = vmatpush1.xpose.msra.mxu0 0.0
        %553 = vmatprep.subr.mxu0 0.0
        %554 = vmatpush1.xpose.msra.mxu0 0.0
        %555 = vmatprep.subr.mxu0 0.0
        %556 = vmatpush1.xpose.msra.mxu0 0.0
        %557 = vmatprep.subr.mxu0 0.0
        %558 = vmatpush1.xpose.msra.mxu0 0.0
        %559 = vmatprep.subr.mxu0 0.0
        %560 = vmatpush1.xpose.msra.mxu0 0.0
        %561 = vmatprep.subr.mxu0 0.0
        %562 = vmatpush1.xpose.msra.mxu0 0.0
        %563 = vmatprep.subr.mxu0 0.0
        %564 = vmatpush1.xpose.msra.mxu0 0.0
        %565 = vmatprep.subr.mxu0 0.0
        %566 = vmatpush1.xpose.msra.mxu0 0.0
        %567 = vmatprep.subr.mxu0 0.0
        %568 = vmatpush1.xpose.msra.mxu0 0.0
        %569 = vmatprep.subr.mxu0 0.0
        %570 = vmatpush1.xpose.msra.mxu0 0.0
        %571 = vmatprep.subr.mxu0 0.0
        %572 = vmatpush1.xpose.msra.mxu0 0.0
        %573 = vmatprep.subr.mxu0 0.0
        %574 = vmatpush1.xpose.msra.mxu0 0.0
        %575 = vmatprep.subr.mxu0 0.0
        %576 = vmatpush1.xpose.msra.mxu0 0.0
        %577 = vmatprep.subr.mxu0 0.0
        %578 = vmatpush1.xpose.msra.mxu0 0.0
        %579 = vmatprep.subr.mxu0 0.0
        %580 = vmatpush1.xpose.msra.mxu0 0.0
        %581 = vmatprep.subr.mxu0 0.0
        %582 = vmatpush1.xpose.msra.mxu0 0.0
        %583 = vmatprep.subr.mxu0 0.0
        %584 = vmatpush1.xpose.msra.mxu0 0.0
        %585 = vmatprep.subr.mxu0 0.0
        %586 = vmatpush1.xpose.msra.mxu0 0.0
        %587 = vmatprep.subr.mxu0 0.0
        %588 = vmatpush1.xpose.msra.mxu0 0.0
        %589 = vmatprep.subr.mxu0 0.0
        %590 = vmatpush1.xpose.msra.mxu0 0.0
        %591 = vmatprep.subr.mxu0 0.0
        %592 = vmatpush1.xpose.msra.mxu0 0.0
        %593 = vmatprep.subr.mxu0 0.0
        %594 = vmatpush1.xpose.msra.mxu0 0.0
        %595 = vmatprep.mubr.f32.mxu0 0.0
        %596 = vmatmul.mubr.f32.gmra.mrb[0].mxu0 %v529
        %v597 = vpop.f32.mrb[0].mxu0
        %v598 = vadd.f32 %v360, %v597
        %v599 = vpop.f32.mrb[0].mxu0
        %600 = vdwg.mxu0
        %v601 = vsel %vm364, %v598, -inf
        %602 = vmax.xlane.f32.xlu0 %v601
        %v603 = vpop.xlane.xlu0 %602
        %v604 = vsub.f32 %v598, %v603
        %v605 = vmul.f32 %v604, 1.442695
        %v606 = vpow.pop %v605
        %v607 = vsel %vm364, %v606, 0.0
        %608 = vadd.xlane.f32.xlu0 %v607
        %v609 = vpop.xlane.xlu0 %608
        %v610 = vrcp.pop %v609
        %v611 = vmul.f32 %v606, %v610
        %v613 = vsel %vm364, %v611, 0
        %615 = vmatprep.subr.mxu0 0.0
        %616 = vmatpush1.msra.mxu0 %v451
        %617 = vmatprep.subr.mxu0 0.0
        %618 = vmatpush1.msra.mxu0 0.0
        %619 = vmatprep.subr.mxu0 0.0
        %620 = vmatpush1.msra.mxu0 0.0
        %621 = vmatprep.subr.mxu0 0.0
        %622 = vmatpush1.msra.mxu0 0.0
        %623 = vmatprep.subr.mxu0 0.0
        %624 = vmatpush1.msra.mxu0 0.0
        %625 = vmatprep.subr.mxu0 0.0
        %626 = vmatpush1.msra.mxu0 0.0
        %627 = vmatprep.subr.mxu0 0.0
        %628 = vmatpush1.msra.mxu0 0.0
        %629 = vmatprep.subr.mxu0 0.0
        %630 = vmatpush1.msra.mxu0 0.0
        %631 = vmatprep.subr.mxu0 0.0
        %632 = vmatpush1.msra.mxu0 0.0
        %633 = vmatprep.subr.mxu0 0.0
        %634 = vmatpush1.msra.mxu0 0.0
        %635 = vmatprep.subr.mxu0 0.0
        %636 = vmatpush1.msra.mxu0 0.0
        %637 = vmatprep.subr.mxu0 0.0
        %638 = vmatpush1.msra.mxu0 0.0
        %639 = vmatprep.subr.mxu0 0.0
        %640 = vmatpush1.msra.mxu0 0.0
        %641 = vmatprep.subr.mxu0 0.0
        %642 = vmatpush1.msra.mxu0 0.0
        %643 = vmatprep.subr.mxu0 0.0
        %644 = vmatpush1.msra.mxu0 0.0
        %645 = vmatprep.subr.mxu0 0.0
        %646 = vmatpush1.msra.mxu0 0.0
        %647 = vmatprep.subr.mxu0 0.0
        %648 = vmatpush1.msra.mxu0 0.0
        %649 = vmatprep.subr.mxu0 0.0
        %650 = vmatpush1.msra.mxu0 0.0
        %651 = vmatprep.subr.mxu0 0.0
        %652 = vmatpush1.msra.mxu0 0.0
        %653 = vmatprep.subr.mxu0 0.0
        %654 = vmatpush1.msra.mxu0 0.0
        %655 = vmatprep.subr.mxu0 0.0
        %656 = vmatpush1.msra.mxu0 0.0
        %657 = vmatprep.subr.mxu0 0.0
        %658 = vmatpush1.msra.mxu0 0.0
        %659 = vmatprep.subr.mxu0 0.0
        %660 = vmatpush1.msra.mxu0 0.0
        %661 = vmatprep.subr.mxu0 0.0
        %662 = vmatpush1.msra.mxu0 0.0
        %663 = vmatprep.subr.mxu0 0.0
        %664 = vmatpush1.msra.mxu0 0.0
        %665 = vmatprep.subr.mxu0 0.0
        %666 = vmatpush1.msra.mxu0 0.0
        %667 = vmatprep.subr.mxu0 0.0
        %668 = vmatpush1.msra.mxu0 0.0
        %669 = vmatprep.subr.mxu0 0.0
        %670 = vmatpush1.msra.mxu0 0.0
        %671 = vmatprep.subr.mxu0 0.0
        %672 = vmatpush1.msra.mxu0 0.0
        %673 = vmatprep.subr.mxu0 0.0
        %674 = vmatpush1.msra.mxu0 0.0
        %675 = vmatprep.subr.mxu0 0.0
        %676 = vmatpush1.msra.mxu0 0.0
        %677 = vmatprep.subr.mxu0 0.0
        %678 = vmatpush1.msra.mxu0 0.0
        %679 = vmatprep.mubr.f32.mxu0 0.0
        %680 = vmatmul.mubr.f32.gmra.mrb[0].mxu0 %v613
        %v681 = vpop.f32.mrb[0].mxu0
        %v682 = vadd.f32 0.0, %v681
        %v683 = vpop.f32.mrb[0].mxu0
        %684 = vdwg.mxu0
        %686 = vrot.lane.b32.xlu0 %v682, 8
        %v687 = vpop.permute.xlu0 %686
        %vm689 = vcmask 130112
        %690 = vst.msk [vmem:[#allocation2] sm:$0xff] %vm689, %v687
        %691 = vrot.lane.b32.xlu0 %v352, 112
        %v692 = vpop.permute.xlu0 %691
        %693 = vrot.lane.b32.xlu0 %v352, 88
        %v694 = vpop.permute.xlu0 %693
        %v695 = vsel %vm364, %v692, 0
        %v697 = vsel %vm364, %v694, 0
        %699 = vmatprep.subr.mxu0 0.0
        %700 = vmatpush1.xpose.msra.mxu0 %v697
        %701 = vmatprep.subr.mxu0 0.0
        %702 = vmatpush1.xpose.msra.mxu0 0.0
        %703 = vmatprep.subr.mxu0 0.0
        %704 = vmatpush1.xpose.msra.mxu0 0.0
        %705 = vmatprep.subr.mxu0 0.0
        %706 = vmatpush1.xpose.msra.mxu0 0.0
        %707 = vmatprep.subr.mxu0 0.0
        %708 = vmatpush1.xpose.msra.mxu0 0.0
        %709 = vmatprep.subr.mxu0 0.0
        %710 = vmatpush1.xpose.msra.mxu0 0.0
        %711 = vmatprep.subr.mxu0 0.0
        %712 = vmatpush1.xpose.msra.mxu0 0.0
        %713 = vmatprep.subr.mxu0 0.0
        %714 = vmatpush1.xpose.msra.mxu0 0.0
        %715 = vmatprep.subr.mxu0 0.0
        %716 = vmatpush1.xpose.msra.mxu0 0.0
        %717 = vmatprep.subr.mxu0 0.0
        %718 = vmatpush1.xpose.msra.mxu0 0.0
        %719 = vmatprep.subr.mxu0 0.0
        %720 = vmatpush1.xpose.msra.mxu0 0.0
        %721 = vmatprep.subr.mxu0 0.0
        %722 = vmatpush1.xpose.msra.mxu0 0.0
        %723 = vmatprep.subr.mxu0 0.0
        %724 = vmatpush1.xpose.msra.mxu0 0.0
        %725 = vmatprep.subr.mxu0 0.0
        %726 = vmatpush1.xpose.msra.mxu0 0.0
        %727 = vmatprep.subr.mxu0 0.0
        %728 = vmatpush1.xpose.msra.mxu0 0.0
        %729 = vmatprep.subr.mxu0 0.0
        %730 = vmatpush1.xpose.msra.mxu0 0.0
        %731 = vmatprep.subr.mxu0 0.0
        %732 = vmatpush1.xpose.msra.mxu0 0.0
        %733 = vmatprep.subr.mxu0 0.0
        %734 = vmatpush1.xpose.msra.mxu0 0.0
        %735 = vmatprep.subr.mxu0 0.0
        %736 = vmatpush1.xpose.msra.mxu0 0.0
        %737 = vmatprep.subr.mxu0 0.0
        %738 = vmatpush1.xpose.msra.mxu0 0.0
        %739 = vmatprep.subr.mxu0 0.0
        %740 = vmatpush1.xpose.msra.mxu0 0.0
        %741 = vmatprep.subr.mxu0 0.0
        %742 = vmatpush1.xpose.msra.mxu0 0.0
        %743 = vmatprep.subr.mxu0 0.0
        %744 = vmatpush1.xpose.msra.mxu0 0.0
        %745 = vmatprep.subr.mxu0 0.0
        %746 = vmatpush1.xpose.msra.mxu0 0.0
        %747 = vmatprep.subr.mxu0 0.0
        %748 = vmatpush1.xpose.msra.mxu0 0.0
        %749 = vmatprep.subr.mxu0 0.0
        %750 = vmatpush1.xpose.msra.mxu0 0.0
        %751 = vmatprep.subr.mxu0 0.0
        %752 = vmatpush1.xpose.msra.mxu0 0.0
        %753 = vmatprep.subr.mxu0 0.0
        %754 = vmatpush1.xpose.msra.mxu0 0.0
        %755 = vmatprep.subr.mxu0 0.0
        %756 = vmatpush1.xpose.msra.mxu0 0.0
        %757 = vmatprep.subr.mxu0 0.0
        %758 = vmatpush1.xpose.msra.mxu0 0.0
        %759 = vmatprep.subr.mxu0 0.0
        %760 = vmatpush1.xpose.msra.mxu0 0.0
        %761 = vmatprep.subr.mxu0 0.0
        %762 = vmatpush1.xpose.msra.mxu0 0.0
        %763 = vmatprep.mubr.f32.mxu0 0.0
        %764 = vmatmul.mubr.f32.gmra.mrb[0].mxu0 %v695
        %v765 = vpop.f32.mrb[0].mxu0
        %v766 = vadd.f32 %v360, %v765
        %v767 = vpop.f32.mrb[0].mxu0
        %768 = vdwg.mxu0
        %v769 = vsel %vm364, %v766, -inf
        %770 = vmax.xlane.f32.xlu0 %v769
        %v771 = vpop.xlane.xlu0 %770
        %v772 = vsub.f32 %v766, %v771
        %v773 = vmul.f32 %v772, 1.442695
        %v774 = vpow.pop %v773
        %v775 = vsel %vm364, %v774, 0.0
        %776 = vadd.xlane.f32.xlu0 %v775
        %v777 = vpop.xlane.xlu0 %776
        %v778 = vrcp.pop %v777
        %v779 = vmul.f32 %v774, %v778
        %780 = vrot.lane.b32.xlu0 %v352, 72
        %v781 = vpop.permute.xlu0 %780
        %v784 = vsel %vm364, %v779, 0
        %786 = vmatprep.subr.mxu0 0.0
        %787 = vmatpush1.msra.mxu0 %v781
        %788 = vmatprep.subr.mxu0 0.0
        %789 = vmatpush1.msra.mxu0 0.0
        %790 = vmatprep.subr.mxu0 0.0
        %791 = vmatpush1.msra.mxu0 0.0
        %792 = vmatprep.subr.mxu0 0.0
        %793 = vmatpush1.msra.mxu0 0.0
        %794 = vmatprep.subr.mxu0 0.0
        %795 = vmatpush1.msra.mxu0 0.0
        %796 = vmatprep.subr.mxu0 0.0
        %797 = vmatpush1.msra.mxu0 0.0
        %798 = vmatprep.subr.mxu0 0.0
        %799 = vmatpush1.msra.mxu0 0.0
        %800 = vmatprep.subr.mxu0 0.0
        %801 = vmatpush1.msra.mxu0 0.0
        %802 = vmatprep.subr.mxu0 0.0
        %803 = vmatpush1.msra.mxu0 0.0
        %804 = vmatprep.subr.mxu0 0.0
        %805 = vmatpush1.msra.mxu0 0.0
        %806 = vmatprep.subr.mxu0 0.0
        %807 = vmatpush1.msra.mxu0 0.0
        %808 = vmatprep.subr.mxu0 0.0
        %809 = vmatpush1.msra.mxu0 0.0
        %810 = vmatprep.subr.mxu0 0.0
        %811 = vmatpush1.msra.mxu0 0.0
        %812 = vmatprep.subr.mxu0 0.0
        %813 = vmatpush1.msra.mxu0 0.0
        %814 = vmatprep.subr.mxu0 0.0
        %815 = vmatpush1.msra.mxu0 0.0
        %816 = vmatprep.subr.mxu0 0.0
        %817 = vmatpush1.msra.mxu0 0.0
        %818 = vmatprep.subr.mxu0 0.0
        %819 = vmatpush1.msra.mxu0 0.0
        %820 = vmatprep.subr.mxu0 0.0
        %821 = vmatpush1.msra.mxu0 0.0
        %822 = vmatprep.subr.mxu0 0.0
        %823 = vmatpush1.msra.mxu0 0.0
        %824 = vmatprep.subr.mxu0 0.0
        %825 = vmatpush1.msra.mxu0 0.0
        %826 = vmatprep.subr.mxu0 0.0
        %827 = vmatpush1.msra.mxu0 0.0
        %828 = vmatprep.subr.mxu0 0.0
        %829 = vmatpush1.msra.mxu0 0.0
        %830 = vmatprep.subr.mxu0 0.0
        %831 = vmatpush1.msra.mxu0 0.0
        %832 = vmatprep.subr.mxu0 0.0
        %833 = vmatpush1.msra.mxu0 0.0
        %834 = vmatprep.subr.mxu0 0.0
        %835 = vmatpush1.msra.mxu0 0.0
        %836 = vmatprep.subr.mxu0 0.0
        %837 = vmatpush1.msra.mxu0 0.0
        %838 = vmatprep.subr.mxu0 0.0
        %839 = vmatpush1.msra.mxu0 0.0
        %840 = vmatprep.subr.mxu0 0.0
        %841 = vmatpush1.msra.mxu0 0.0
        %842 = vmatprep.subr.mxu0 0.0
        %843 = vmatpush1.msra.mxu0 0.0
        %844 = vmatprep.subr.mxu0 0.0
        %845 = vmatpush1.msra.mxu0 0.0
        %846 = vmatprep.subr.mxu0 0.0
        %847 = vmatpush1.msra.mxu0 0.0
        %848 = vmatprep.subr.mxu0 0.0
        %849 = vmatpush1.msra.mxu0 0.0
        %850 = vmatprep.mubr.f32.mxu0 0.0
        %851 = vmatmul.mubr.f32.gmra.mrb[0].mxu0 %v784
        %v852 = vpop.f32.mrb[0].mxu0
        %v853 = vadd.f32 0.0, %v852
        %v854 = vpop.f32.mrb[0].mxu0
        %855 = vdwg.mxu0
        %857 = vrot.lane.b32.xlu0 %v853, 16
        %v858 = vpop.permute.xlu0 %857
        %vm860 = vcmask 195712
        %861 = vst.msk [vmem:[#allocation2] sm:$0xff] %vm860, %v858
        %862 = vrot.lane.b32.xlu0 %v352, 104
        %v863 = vpop.permute.xlu0 %862
        %v864 = vsel %vm364, %v863, 0
        %866 = vmatprep.subr.mxu0 0.0
        %867 = vmatpush1.xpose.msra.mxu0 %v697
        %868 = vmatprep.subr.mxu0 0.0
        %869 = vmatpush1.xpose.msra.mxu0 0.0
        %870 = vmatprep.subr.mxu0 0.0
        %871 = vmatpush1.xpose.msra.mxu0 0.0
        %872 = vmatprep.subr.mxu0 0.0
        %873 = vmatpush1.xpose.msra.mxu0 0.0
        %874 = vmatprep.subr.mxu0 0.0
        %875 = vmatpush1.xpose.msra.mxu0 0.0
        %876 = vmatprep.subr.mxu0 0.0
        %877 = vmatpush1.xpose.msra.mxu0 0.0
        %878 = vmatprep.subr.mxu0 0.0
        %879 = vmatpush1.xpose.msra.mxu0 0.0
        %880 = vmatprep.subr.mxu0 0.0
        %881 = vmatpush1.xpose.msra.mxu0 0.0
        %882 = vmatprep.subr.mxu0 0.0
        %883 = vmatpush1.xpose.msra.mxu0 0.0
        %884 = vmatprep.subr.mxu0 0.0
        %885 = vmatpush1.xpose.msra.mxu0 0.0
        %886 = vmatprep.subr.mxu0 0.0
        %887 = vmatpush1.xpose.msra.mxu0 0.0
        %888 = vmatprep.subr.mxu0 0.0
        %889 = vmatpush1.xpose.msra.mxu0 0.0
        %890 = vmatprep.subr.mxu0 0.0
        %891 = vmatpush1.xpose.msra.mxu0 0.0
        %892 = vmatprep.subr.mxu0 0.0
        %893 = vmatpush1.xpose.msra.mxu0 0.0
        %894 = vmatprep.subr.mxu0 0.0
        %895 = vmatpush1.xpose.msra.mxu0 0.0
        %896 = vmatprep.subr.mxu0 0.0
        %897 = vmatpush1.xpose.msra.mxu0 0.0
        %898 = vmatprep.subr.mxu0 0.0
        %899 = vmatpush1.xpose.msra.mxu0 0.0
        %900 = vmatprep.subr.mxu0 0.0
        %901 = vmatpush1.xpose.msra.mxu0 0.0
        %902 = vmatprep.subr.mxu0 0.0
        %903 = vmatpush1.xpose.msra.mxu0 0.0
        %904 = vmatprep.subr.mxu0 0.0
        %905 = vmatpush1.xpose.msra.mxu0 0.0
        %906 = vmatprep.subr.mxu0 0.0
        %907 = vmatpush1.xpose.msra.mxu0 0.0
        %908 = vmatprep.subr.mxu0 0.0
        %909 = vmatpush1.xpose.msra.mxu0 0.0
        %910 = vmatprep.subr.mxu0 0.0
        %911 = vmatpush1.xpose.msra.mxu0 0.0
        %912 = vmatprep.subr.mxu0 0.0
        %913 = vmatpush1.xpose.msra.mxu0 0.0
        %914 = vmatprep.subr.mxu0 0.0
        %915 = vmatpush1.xpose.msra.mxu0 0.0
        %916 = vmatprep.subr.mxu0 0.0
        %917 = vmatpush1.xpose.msra.mxu0 0.0
        %918 = vmatprep.subr.mxu0 0.0
        %919 = vmatpush1.xpose.msra.mxu0 0.0
        %920 = vmatprep.subr.mxu0 0.0
        %921 = vmatpush1.xpose.msra.mxu0 0.0
        %922 = vmatprep.subr.mxu0 0.0
        %923 = vmatpush1.xpose.msra.mxu0 0.0
        %924 = vmatprep.subr.mxu0 0.0
        %925 = vmatpush1.xpose.msra.mxu0 0.0
        %926 = vmatprep.subr.mxu0 0.0
        %927 = vmatpush1.xpose.msra.mxu0 0.0
        %928 = vmatprep.subr.mxu0 0.0
        %929 = vmatpush1.xpose.msra.mxu0 0.0
        %930 = vmatprep.mubr.f32.mxu0 0.0
        %931 = vmatmul.mubr.f32.gmra.mrb[0].mxu0 %v864
        %v932 = vpop.f32.mrb[0].mxu0
        %v933 = vadd.f32 %v360, %v932
        %v934 = vpop.f32.mrb[0].mxu0
        %935 = vdwg.mxu0
        %v936 = vsel %vm364, %v933, -inf
        %937 = vmax.xlane.f32.xlu0 %v936
        %v938 = vpop.xlane.xlu0 %937
        %v939 = vsub.f32 %v933, %v938
        %v940 = vmul.f32 %v939, 1.442695
        %v941 = vpow.pop %v940
        %v942 = vsel %vm364, %v941, 0.0
        %943 = vadd.xlane.f32.xlu0 %v942
        %v944 = vpop.xlane.xlu0 %943
        %v945 = vrcp.pop %v944
        %v946 = vmul.f32 %v941, %v945
        %v948 = vsel %vm364, %v946, 0
        %950 = vmatprep.subr.mxu0 0.0
        %951 = vmatpush1.msra.mxu0 %v781
        %952 = vmatprep.subr.mxu0 0.0
        %953 = vmatpush1.msra.mxu0 0.0
        %954 = vmatprep.subr.mxu0 0.0
        %955 = vmatpush1.msra.mxu0 0.0
        %956 = vmatprep.subr.mxu0 0.0
        %957 = vmatpush1.msra.mxu0 0.0
        %958 = vmatprep.subr.mxu0 0.0
        %959 = vmatpush1.msra.mxu0 0.0
        %960 = vmatprep.subr.mxu0 0.0
        %961 = vmatpush1.msra.mxu0 0.0
        %962 = vmatprep.subr.mxu0 0.0
        %963 = vmatpush1.msra.mxu0 0.0
        %964 = vmatprep.subr.mxu0 0.0
        %965 = vmatpush1.msra.mxu0 0.0
        %966 = vmatprep.subr.mxu0 0.0
        %967 = vmatpush1.msra.mxu0 0.0
        %968 = vmatprep.subr.mxu0 0.0
        %969 = vmatpush1.msra.mxu0 0.0
        %970 = vmatprep.subr.mxu0 0.0
        %971 = vmatpush1.msra.mxu0 0.0
        %972 = vmatprep.subr.mxu0 0.0
        %973 = vmatpush1.msra.mxu0 0.0
        %974 = vmatprep.subr.mxu0 0.0
        %975 = vmatpush1.msra.mxu0 0.0
        %976 = vmatprep.subr.mxu0 0.0
        %977 = vmatpush1.msra.mxu0 0.0
        %978 = vmatprep.subr.mxu0 0.0
        %979 = vmatpush1.msra.mxu0 0.0
        %980 = vmatprep.subr.mxu0 0.0
        %981 = vmatpush1.msra.mxu0 0.0
        %982 = vmatprep.subr.mxu0 0.0
        %983 = vmatpush1.msra.mxu0 0.0
        %984 = vmatprep.subr.mxu0 0.0
        %985 = vmatpush1.msra.mxu0 0.0
        %986 = vmatprep.subr.mxu0 0.0
        %987 = vmatpush1.msra.mxu0 0.0
        %988 = vmatprep.subr.mxu0 0.0
        %989 = vmatpush1.msra.mxu0 0.0
        %990 = vmatprep.subr.mxu0 0.0
        %991 = vmatpush1.msra.mxu0 0.0
        %992 = vmatprep.subr.mxu0 0.0
        %993 = vmatpush1.msra.mxu0 0.0
        %994 = vmatprep.subr.mxu0 0.0
        %995 = vmatpush1.msra.mxu0 0.0
        %996 = vmatprep.subr.mxu0 0.0
        %997 = vmatpush1.msra.mxu0 0.0
        %998 = vmatprep.subr.mxu0 0.0
        %999 = vmatpush1.msra.mxu0 0.0
        %1000 = vmatprep.subr.mxu0 0.0
        %1001 = vmatpush1.msra.mxu0 0.0
        %1002 = vmatprep.subr.mxu0 0.0
        %1003 = vmatpush1.msra.mxu0 0.0
        %1004 = vmatprep.subr.mxu0 0.0
        %1005 = vmatpush1.msra.mxu0 0.0
        %1006 = vmatprep.subr.mxu0 0.0
        %1007 = vmatpush1.msra.mxu0 0.0
        %1008 = vmatprep.subr.mxu0 0.0
        %1009 = vmatpush1.msra.mxu0 0.0
        %1010 = vmatprep.subr.mxu0 0.0
        %1011 = vmatpush1.msra.mxu0 0.0
        %1012 = vmatprep.subr.mxu0 0.0
        %1013 = vmatpush1.msra.mxu0 0.0
        %1014 = vmatprep.mubr.f32.mxu0 0.0
        %1015 = vmatmul.mubr.f32.gmra.mrb[0].mxu0 %v948
        %v1016 = vpop.f32.mrb[0].mxu0
        %v1017 = vadd.f32 0.0, %v1016
        %v1018 = vpop.f32.mrb[0].mxu0
        %1019 = vdwg.mxu0
        %1021 = vrot.lane.b32.xlu0 %v1017, 24
        %v1022 = vpop.permute.xlu0 %1021
        %vm1024 = vcmask 261312
        %1025 = vst.msk [vmem:[#allocation2] sm:$0xff] %vm1024, %v1022
        %v1026 = vld [vmem:[#allocation2] sm:$0xff]
        %v1027 = vld [vmem:[#allocation8] sm:$0xff]
        %v1028 = vld [vmem:[#allocation8 + $0x8] sm:$0xff]
        %v1029 = vld [vmem:[#allocation8 + $0x10] sm:$0xff]
        %v1030 = vld [vmem:[#allocation8 + $0x18] sm:$0xff]
        %v1031 = vld [vmem:[%s4] sm:$0x1]
        %v1033 = vlaneseq
        %v1034 = vshrl.u32 %v1033, 7
        %v1035 = vsub.s32 0, %v1034
        %v1036 = vrot.slane %v1031, %v1035
        %v1039 = vsel %vm281, %v1026, 0
        %1041 = vmatprep.subr.mxu0 0.0
        %1042 = vmatpush1.msra.mxu0 %v1027
        %1043 = vmatprep.subr.mxu0 0.0
        %1044 = vmatpush1.msra.mxu0 %v1028
        %1045 = vmatprep.subr.mxu0 0.0
        %1046 = vmatpush1.msra.mxu0 %v1029
        %1047 = vmatprep.subr.mxu0 0.0
        %1048 = vmatpush1.msra.mxu0 %v1030
        %1049 = vmatprep.subr.mxu0 0.0
        %1050 = vmatpush1.msra.mxu0 0.0
        %1051 = vmatprep.subr.mxu0 0.0
        %1052 = vmatpush1.msra.mxu0 0.0
        %1053 = vmatprep.subr.mxu0 0.0
        %1054 = vmatpush1.msra.mxu0 0.0
        %1055 = vmatprep.subr.mxu0 0.0
        %1056 = vmatpush1.msra.mxu0 0.0
        %1057 = vmatprep.subr.mxu0 0.0
        %1058 = vmatpush1.msra.mxu0 0.0
        %1059 = vmatprep.subr.mxu0 0.0
        %1060 = vmatpush1.msra.mxu0 0.0
        %1061 = vmatprep.subr.mxu0 0.0
        %1062 = vmatpush1.msra.mxu0 0.0
        %1063 = vmatprep.subr.mxu0 0.0
        %1064 = vmatpush1.msra.mxu0 0.0
        %1065 = vmatprep.subr.mxu0 0.0
        %1066 = vmatpush1.msra.mxu0 0.0
        %1067 = vmatprep.subr.mxu0 0.0
        %1068 = vmatpush1.msra.mxu0 0.0
        %1069 = vmatprep.subr.mxu0 0.0
        %1070 = vmatpush1.msra.mxu0 0.0
        %1071 = vmatprep.subr.mxu0 0.0
        %1072 = vmatpush1.msra.mxu0 0.0
        %1073 = vmatprep.subr.mxu0 0.0
        %1074 = vmatpush1.msra.mxu0 0.0
        %1075 = vmatprep.subr.mxu0 0.0
        %1076 = vmatpush1.msra.mxu0 0.0
        %1077 = vmatprep.subr.mxu0 0.0
        %1078 = vmatpush1.msra.mxu0 0.0
        %1079 = vmatprep.subr.mxu0 0.0
        %1080 = vmatpush1.msra.mxu0 0.0
        %1081 = vmatprep.subr.mxu0 0.0
        %1082 = vmatpush1.msra.mxu0 0.0
        %1083 = vmatprep.subr.mxu0 0.0
        %1084 = vmatpush1.msra.mxu0 0.0
        %1085 = vmatprep.subr.mxu0 0.0
        %1086 = vmatpush1.msra.mxu0 0.0
        %1087 = vmatprep.subr.mxu0 0.0
        %1088 = vmatpush1.msra.mxu0 0.0
        %1089 = vmatprep.subr.mxu0 0.0
        %1090 = vmatpush1.msra.mxu0 0.0
        %1091 = vmatprep.subr.mxu0 0.0
        %1092 = vmatpush1.msra.mxu0 0.0
        %1093 = vmatprep.subr.mxu0 0.0
        %1094 = vmatpush1.msra.mxu0 0.0
        %1095 = vmatprep.subr.mxu0 0.0
        %1096 = vmatpush1.msra.mxu0 0.0
        %1097 = vmatprep.subr.mxu0 0.0
        %1098 = vmatpush1.msra.mxu0 0.0
        %1099 = vmatprep.subr.mxu0 0.0
        %1100 = vmatpush1.msra.mxu0 0.0
        %1101 = vmatprep.subr.mxu0 0.0
        %1102 = vmatpush1.msra.mxu0 0.0
        %1103 = vmatprep.subr.mxu0 0.0
        %1104 = vmatpush1.msra.mxu0 0.0
        %1105 = vmatprep.mubr.f32.mxu0 0.0
        %1106 = vmatmul.mubr.f32.gmra.mrb[0].mxu0 %v1039
        %v1107 = vpop.f32.mrb[0].mxu0
        %v1108 = vadd.f32 %v1036, %v1107
        %v1109 = vpop.f32.mrb[0].mxu0
        %1110 = vdwg.mxu0
        %1111 = vst.msk [vmem:[%s268] sm:$0xff] %vm281, %v1108
        %s1112 = sand.u32 %s141, 1
        %s1113 = scalar_lea.sflag [#allocation5], %s1112
        %s1114 = sand.u32 %s141, 1
        %s1115 = smul.addr %s1114, 8
        %s1116 = scalar_lea.vmem [#allocation9], %s1115
        // Predicated region
        $region53: #{tpu_custom_call.1} parent=39 // pred_check
          %p1117 = pneg %p151
        $region54: #{tpu_custom_call.1} parent=39 // pred_check_branch
          %1119 = sbr.rel (%p1117) target = $region56
        $region55: #{tpu_custom_call.1} parent=39 // pred_region
          %s1121 = ssub.s32 128, 128
          %1122 = vsyncadd %s1113, %s1121
          %s1123 = smul.addr %s23, 128
          %s1124 = scalar_lea.hbm %s5, %s1123
          %s1126 = sshll.u32 %s1116, 4
          %s1127 = int_to_ptr.vmem [resolvable:$true] %s1126
          %1129 = dma.vmem_to_hbm [thread:$0]  %s1127, 128, %s1124, %s1113
        $region56: #{tpu_custom_call.1} parent=39 // pred_fallthru
          _
      $region40: #{tpu_custom_call.1} parent=5 // pred_fallthru
        _
      %p1130 = scmp.le.s32.totalorder 2, %s18
      // Predicated region
      $region57: #{tpu_custom_call.1} parent=5 // pred_check
        %p1131 = pneg %p1130
      $region58: #{tpu_custom_call.1} parent=5 // pred_check_branch
        %1133 = sbr.rel (%p1131) target = $region60
      $region59: #{tpu_custom_call.1} parent=5 // pred_region
        %s1134 = ssub.s32 %s18, 2
        // Predicated region
        $region61: #{tpu_custom_call.1} parent=59 // pred_check
          %p1135 = pneg %p157
        $region62: #{tpu_custom_call.1} parent=59 // pred_check_branch
          %1137 = sbr.rel (%p1135) target = $region64
        $region63: #{tpu_custom_call.1} parent=59 // pred_region
          %s1138 = sand.u32 %s142, 1
          %s1139 = scalar_lea.sflag [#allocation5], %s1138
          %s1140 = sand.u32 %s142, 1
          %s1141 = smul.addr %s1140, 8
          %s1142 = scalar_lea.vmem [#allocation9], %s1141
          %1143 = dma.done %s1139, 128
        $region64: #{tpu_custom_call.1} parent=59 // pred_fallthru
          _
      $region60: #{tpu_custom_call.1} parent=5 // pred_fallthru
        _
    $region6: #{tpu_custom_call.1} parent=1 // loop_footer
      %s22 = sadd.s32 1, %s18
    $region7: #{tpu_custom_call.1} parent=1 // loop_footer_branch
      %17 = sbr.rel target = $region3
    $region8: #{tpu_custom_call.1} parent=1 // loop_exit
      _
    %1144 = vsyncpa [#allocation4], 1
    %s1145 = scalar_lea.sflag [#allocation4], 1
    %1146 = vsyncpa %s1145, 1
    %1147 = vsyncpa [#allocation7], 1
    %1148 = vsyncpa [#allocation5], 1
    %s1149 = scalar_lea.sflag [#allocation5], 1
    %1150 = vsyncpa %s1149, 1

</llo_original>
